<compile_context>
chip_gen: v5e
topology: v5e:2x2
jax: 0.10.0
libtpu: 0.0.40
codegen_flags: <defaults>
</compile_context>

<pallas_src>
import jax
import jax.numpy as jnp
from jax.experimental import pallas as pl
from jax.experimental.pallas import tpu as pltpu


BETA = 1.0
_HALF_BETA = 0.5 * BETA
_HALF_OVER_BETA = 0.5 / BETA     # hoisted reciprocal: no per-element divide

LANES = 128                      # lane-dense last dim -> full-width vld/vst
MAX_TILE_ROWS = 1024             # (1024,128) f32 = 512 KiB / buffer; 3 inputs
                                 # double-buffered ~3 MiB -> safe on v5e/v6e/v7x
PALLAS_MIN_ELEMS = 32768         # below this, launch/step overhead dominates


def _smooth_l1(pred, target):
    diff = jnp.abs(pred.astype(jnp.float32) - target.astype(jnp.float32))
    return jnp.where(diff < BETA, _HALF_OVER_BETA * diff * diff, diff - _HALF_BETA)


# ---------- sum-reduction kernels (mean/sum): only a scalar leaves the kernel ----------
def _sum_kernel(pred_ref, target_ref, sum_ref, acc_ref):
    pid = pl.program_id(0)

    @pl.when(pid == 0)
    def _():
        acc_ref[0] = jnp.float32(0.0)

    acc_ref[0] += jnp.sum(_smooth_l1(pred_ref[...], target_ref[...]))

    @pl.when(pid == pl.num_programs(0) - 1)
    def _():
        sum_ref[0] = acc_ref[0]


def _sum_kernel_weighted(pred_ref, target_ref, weight_ref, sum_ref, acc_ref):
    pid = pl.program_id(0)

    @pl.when(pid == 0)
    def _():
        acc_ref[0] = jnp.float32(0.0)

    elem = _smooth_l1(pred_ref[...], target_ref[...]) * weight_ref[...].astype(jnp.float32)
    acc_ref[0] += jnp.sum(elem)

    @pl.when(pid == pl.num_programs(0) - 1)
    def _():
        sum_ref[0] = acc_ref[0]


# ---------- elementwise kernels (reduction='none'): no scalar output ----------
def _elem_kernel(pred_ref, target_ref, out_ref):
    out_ref[...] = _smooth_l1(pred_ref[...], target_ref[...])


def _elem_kernel_weighted(pred_ref, target_ref, weight_ref, out_ref):
    out_ref[...] = (_smooth_l1(pred_ref[...], target_ref[...])
                    * weight_ref[...].astype(jnp.float32))


# ---------- layout plumbing ----------
def _round_up(x, m):
    return -(-x // m) * m


def _lane_dense(arrs, n_elem):
    """Flatten, zero-pad, reshape to [rows_total, 128] with rows_total % tile_rows == 0.

    Padding is zero for pred AND target, so padded elements contribute exactly 0
    to the loss sum (smooth-L1 of 0 is 0)."""
    rows = max(8, _round_up(_round_up(n_elem, LANES) // LANES, 8))
    tile_rows = min(MAX_TILE_ROWS, rows)
    rows_total = _round_up(rows, tile_rows)
    total = rows_total * LANES
    out = []
    for a in arrs:
        if a is None:
            out.append(None)
            continue
        flat = a.reshape(-1)
        if total > n_elem:
            flat = jnp.pad(flat, (0, total - n_elem))
        out.append(flat.reshape(rows_total, LANES))
    return out, tile_rows, rows_total


# ---------- pallas_call wrappers ----------
def _pallas_sum(pred2d, target2d, weight2d, tile_rows):
    rows = pred2d.shape[0]
    grid = (rows // tile_rows,)
    spec = pl.BlockSpec((tile_rows, LANES), lambda i: (i, 0))
    if weight2d is None:
        kernel, in_specs, args = _sum_kernel, [spec, spec], (pred2d, target2d)
    else:
        kernel, in_specs, args = (_sum_kernel_weighted, [spec, spec, spec],
                                  (pred2d, target2d, weight2d))
    total = pl.pallas_call(
        kernel,
        out_shape=jax.ShapeDtypeStruct((1,), jnp.float32),
        grid_spec=pltpu.PrefetchScalarGridSpec(
            num_scalar_prefetch=0,
            grid=grid,
            in_specs=in_specs,
            out_specs=pl.BlockSpec(memory_space=pltpu.MemorySpace.SMEM),
            scratch_shapes=[pltpu.SMEM((1,), jnp.float32)],
        ),
        compiler_params=pltpu.CompilerParams(
            dimension_semantics=("arbitrary",)),   # sequential accumulation
    )(*args)
    return total[0]


def _pallas_elem(pred2d, target2d, weight2d, tile_rows):
    rows = pred2d.shape[0]
    grid = (rows // tile_rows,)
    spec = pl.BlockSpec((tile_rows, LANES), lambda i: (i, 0))
    if weight2d is None:
        kernel, in_specs, args = _elem_kernel, [spec, spec], (pred2d, target2d)
    else:
        kernel, in_specs, args = (_elem_kernel_weighted, [spec, spec, spec],
                                  (pred2d, target2d, weight2d))
    return pl.pallas_call(
        kernel,
        out_shape=jax.ShapeDtypeStruct((rows, LANES), jnp.float32),
        grid_spec=pltpu.PrefetchScalarGridSpec(
            num_scalar_prefetch=0,
            grid=grid,
            in_specs=in_specs,
            out_specs=spec,
        ),
        compiler_params=pltpu.CompilerParams(
            dimension_semantics=("parallel",)),    # independent tiles (v7x: 2 TCs)
    )(*args)


class MyLossV2:
    """JAX/Pallas re-implementation of MyLoss_v2's forward pass (smooth-L1)."""

    def __init__(self, reduction="mean", loss_weight=1.0):
        assert reduction in ("none", "mean", "sum")
        self.reduction = reduction
        self.loss_weight = loss_weight

    def __call__(self, pred, target, weight=None, avg_factor=None,
                 reduction_override=None, **kwargs):
        assert reduction_override in (None, "none", "mean", "sum")
        reduction = reduction_override if reduction_override else self.reduction
        assert pred.shape == target.shape

        n_elem = int(pred.size)
        if n_elem == 0:
            if reduction == "none":
                return self.loss_weight * jnp.zeros(pred.shape, jnp.float32)
            return self.loss_weight * jnp.float32(0.0)

        if weight is not None:
            weight = jnp.asarray(weight)
            if weight.ndim == pred.ndim - 1:      # per-box [N] -> [N, 1] (fixes bcast)
                weight = weight[..., None]
            weight = jnp.broadcast_to(weight, pred.shape)

        need_elem = (reduction == "none")
        if n_elem >= PALLAS_MIN_ELEMS:
            (pred2d, target2d, weight2d), tile_rows, _ = _lane_dense(
                [pred, target, weight], n_elem)
            if need_elem:
                loss2d = _pallas_elem(pred2d, target2d, weight2d, tile_rows)
                elem = loss2d.reshape(-1)[:n_elem].reshape(pred.shape)
                total = None
            else:
                total = _pallas_sum(pred2d, target2d, weight2d, tile_rows)
                elem = None
        else:
            # tiny inputs: plain JAX beats any kernel launch
            elem = _smooth_l1(pred, target)
            if weight is not None:
                elem = elem * weight.astype(jnp.float32)
            total = jnp.sum(elem)

        # mmdet weight_reduce_loss semantics (mean = sum / numel, not weighted mean)
        if avg_factor is None:
            if reduction == "none":
                out = elem
            elif reduction == "sum":
                out = total
            else:
                out = total / jnp.float32(n_elem)
        else:
            if reduction == "mean":
                out = total / jnp.float32(avg_factor)
            elif reduction == "none":
                out = elem
            else:
                raise ValueError("avg_factor can not be used with reduction='sum'")

        return self.loss_weight * out


if __name__ == "__main__":
    key = jax.random.PRNGKey(0)
    k_pred, k_tgt, k_w, k_img = jax.random.split(key, 4)

    # Big enough to exercise the tiled Pallas path (grid > 1), still < 1 MB / tensor.
    num_boxes = 40000
    pred = jax.random.normal(k_pred, (num_boxes, 5), dtype=jnp.float32) * 2.0
    target = jax.random.normal(k_tgt, (num_boxes, 5), dtype=jnp.float32) * 2.0
    w_box = jax.random.uniform(k_w, (num_boxes,), dtype=jnp.float32)
    origin_img = jax.random.normal(k_img, (2, 3, 32, 32), dtype=jnp.float32)

    def ref_elem(p, t, w=None):
        d = jnp.abs(p - t)
        l = jnp.where(d < BETA, 0.5 * d * d / BETA, d - 0.5 * BETA)
        return l if w is None else l * w

    # 1) mean, no weight -> Pallas sum kernel (no weight stream, no [N,5] writeback)
    loss_mean = MyLossV2(reduction="mean")(pred, target, oringin_img=origin_img)
    ref_mean = ref_elem(pred, target).mean()
    assert jnp.allclose(loss_mean, ref_mean, rtol=1e-3, atol=1e-5), (loss_mean, ref_mean)

    # 2) sum, per-box weight [N] -> Pallas weighted sum kernel
    loss_sum = MyLossV2(reduction="sum")(pred, target, weight=w_box,
                                         oringin_img=origin_img)
    ref_sum = ref_elem(pred, target, w_box[:, None]).sum()
    assert jnp.allclose(loss_sum, ref_sum, rtol=1e-3, atol=1e-3), (loss_sum, ref_sum)

    # 3) none, full [N,5] weight -> Pallas elementwise kernel (no scalar output)
    w_full = jnp.broadcast_to(w_box[:, None], pred.shape)
    loss_none = MyLossV2(reduction="none")(pred, target, weight=w_full,
                                           oringin_img=origin_img)
    ref_none = ref_elem(pred, target, w_full)
    assert loss_none.shape == pred.shape
    assert jnp.allclose(loss_none, ref_none, rtol=1e-5, atol=1e-6)

    # 4) tiny input -> plain-JAX fallback (Pallas launch overhead not worth it)
    loss_small = MyLossV2(reduction="mean")(pred[:16], target[:16],
                                            oringin_img=origin_img)
    ref_small = ref_elem(pred[:16], target[:16]).mean()
    assert jnp.allclose(loss_small, ref_small, rtol=1e-5, atol=1e-6)

    jax.block_until_ready((loss_mean, loss_sum, loss_none, loss_small))
    print("KERNEL_OK")
</pallas_src>

<mosaic_0001>
module attributes {stable_mosaic.version = 11 : i64} {
  func.func @_sum_kernel(%arg0: i32, %arg1: memref<1024x128xf32, #tpu.memory_space<vmem>>, %arg2: memref<1024x128xf32, #tpu.memory_space<vmem>>, %arg3: memref<1xf32, #tpu.memory_space<smem>>, %arg4: memref<1xf32, #tpu.memory_space<smem>>) attributes {dimension_semantics = [#tpu.dimension_semantics<arbitrary>], iteration_bounds = array<i64: 2>, scalar_prefetch = 0 : i64, scratch_operands = 1 : i64, tpu.core_type = #tpu.core_type<tc>, window_params = [{transform_indices = @transform_0, window_bounds = array<i64: 1024, 128>}, {transform_indices = @transform_1, window_bounds = array<i64: 1024, 128>}, {transform_indices = @transform_2, window_bounds = array<i64: 1>}]} {
    %c0_i32 = arith.constant 0 : i32
    %0 = arith.cmpi eq, %arg0, %c0_i32 : i32
    %1 = arith.extui %0 : i1 to i32
    %c0_i32_0 = arith.constant 0 : i32
    %2 = arith.cmpi ne, %1, %c0_i32_0 : i32
    scf.if %2 {
      %cst_10 = arith.constant 0.000000e+00 : f32
      %c0_11 = arith.constant 0 : index
      %25 = memref.load %arg4[%c0_11] : memref<1xf32, #tpu.memory_space<smem>>
      memref.store %cst_10, %arg4[%c0_11] : memref<1xf32, #tpu.memory_space<smem>>
    } else {
    }
    %c0 = arith.constant 0 : index
    %3 = memref.load %arg4[%c0] : memref<1xf32, #tpu.memory_space<smem>>
    %c0_1 = arith.constant 0 : index
    %c0_2 = arith.constant 0 : index
    %4 = vector.load %arg1[%c0_1, %c0_2] : memref<1024x128xf32, #tpu.memory_space<vmem>>, vector<1024x128xf32>
    %c0_3 = arith.constant 0 : index
    %c0_4 = arith.constant 0 : index
    %5 = vector.load %arg2[%c0_3, %c0_4] : memref<1024x128xf32, #tpu.memory_space<vmem>>, vector<1024x128xf32>
    %6 = arith.subf %4, %5 : vector<1024x128xf32>
    %7 = math.absf %6 : vector<1024x128xf32>
    %cst = arith.constant 1.000000e+00 : f32
    %8 = vector.broadcast %cst : f32 to vector<1024x128xf32>
    %9 = arith.cmpf olt, %7, %8 : vector<1024x128xf32>
    %cst_5 = arith.constant 5.000000e-01 : f32
    %10 = vector.broadcast %cst_5 : f32 to vector<1024x128xf32>
    %11 = arith.mulf %10, %7 : vector<1024x128xf32>
    %12 = arith.mulf %11, %7 : vector<1024x128xf32>
    %cst_6 = arith.constant 5.000000e-01 : f32
    %13 = vector.broadcast %cst_6 : f32 to vector<1024x128xf32>
    %14 = arith.subf %7, %13 : vector<1024x128xf32>
    %15 = arith.select %9, %12, %14 : vector<1024x128xi1>, vector<1024x128xf32>
    %16 = vector.shape_cast %15 : vector<1024x128xf32> to vector<1x1024x128xf32>
    %cst_7 = arith.constant dense<0.000000e+00> : vector<1xf32>
    %17 = vector.multi_reduction <add>, %16, %cst_7 [1, 2] : vector<1x1024x128xf32> to vector<1xf32>
    %18 = vector.shape_cast %17 : vector<1xf32> to vector<1x1x1xf32>
    %19 = vector.extract %18[0, 0, 0] : f32 from vector<1x1x1xf32>
    %20 = arith.addf %3, %19 : f32
    %c0_8 = arith.constant 0 : index
    %21 = memref.load %arg4[%c0_8] : memref<1xf32, #tpu.memory_space<smem>>
    memref.store %20, %arg4[%c0_8] : memref<1xf32, #tpu.memory_space<smem>>
    %c1_i32 = arith.constant 1 : i32
    %22 = arith.cmpi eq, %arg0, %c1_i32 : i32
    %23 = arith.extui %22 : i1 to i32
    %c0_i32_9 = arith.constant 0 : i32
    %24 = arith.cmpi ne, %23, %c0_i32_9 : i32
    scf.if %24 {
      %c0_10 = arith.constant 0 : index
      %25 = memref.load %arg4[%c0_10] : memref<1xf32, #tpu.memory_space<smem>>
      %c0_11 = arith.constant 0 : index
      %26 = memref.load %arg3[%c0_11] : memref<1xf32, #tpu.memory_space<smem>>
      memref.store %25, %arg3[%c0_11] : memref<1xf32, #tpu.memory_space<smem>>
    } else {
    }
    return
  }
  func.func @transform_0(%arg0: i32) -> (i32, i32) {
    %c0_i32 = arith.constant 0 : i32
    %c0_i32_0 = arith.constant 0 : i32
    return %arg0, %c0_i32 : i32, i32
  }
  func.func @transform_1(%arg0: i32) -> (i32, i32) {
    %c0_i32 = arith.constant 0 : i32
    %c0_i32_0 = arith.constant 0 : i32
    return %arg0, %c0_i32 : i32, i32
  }
  func.func @transform_2(%arg0: i32) -> i32 {
    %c0_i32 = arith.constant 0 : i32
    %c0_i32_0 = arith.constant 0 : i32
    return %c0_i32 : i32
  }
}

</mosaic_0001>

<llo_original>
// kernel: tpu_custom_call.1
$region0: #{tpu_custom_call.1}
  #allocation0 [shape = 'u32[]', space=smem, size = 0x4, offset = 0x4, fixed_abs, tag = 'smem constant byte address 0x4 - core index']
  #allocation1 [shape = 'u32[72,128]{1,0:T(1,128)}', space=vmem, size = 0x9000, scoped, tag = 'internal scratch']
  #allocation2 [shape = 'f32[1]{0:T(128)}', space=smem, size = 0x200, scoped, tag = 'scratch operand']
  %s0 = inlined_call_operand.hbm [shape: f32[2048,128], index: 0, kind: input, shape index: {}]
  %s1 = inlined_call_operand.hbm [shape: f32[2048,128], index: 1, kind: input, shape index: {}]
  %s2 = inlined_call_operand.hbm [shape: f32[1], index: 2, kind: output, shape index: {}]
  %s3 = sld [smem:[#allocation0]]
  $region57: #{tpu_custom_call.1} parent=0
    _
  %s5 = ssub.s32 1, %s3
  %s6 = scalar_select 0, %s5, %s3
  $region1: #{tpu_custom_call.1} parent=0
    #allocation3 [shape = 'u8[1048576]{0}', space=vmem, size = 0x100000, scoped, tag = 'input window, operand 0']
    #allocation4 [shape = 's32[2]{0}', space=sflag, size = 0x8, scoped, tag = 'scoped memory for tpu_custom_call.1']
    #allocation5 [shape = 's32[2]{0}', space=sflag, size = 0x8, scoped, tag = 'scoped memory for tpu_custom_call.1']
    #allocation6 [shape = 'u8[1048576]{0}', space=vmem, size = 0x100000, scoped, tag = 'input window, operand 1']
    #allocation7 [shape = 's32[2]{0}', space=sflag, size = 0x8, scoped, tag = 'scoped memory for tpu_custom_call.1']
    #allocation8 [shape = 'u8[512]{0}', space=smem, size = 0x200, scoped, tag = 'output window, operand 0, single buffered']
    %7 = vsyncpa [#allocation4], 0
    %s8 = scalar_lea.sflag [#allocation4], 1
    %9 = vsyncpa %s8, 0
    %10 = vsyncpa [#allocation7], 0
    %s11 = scalar_lea.sflag [#allocation7], 1
    %12 = vsyncpa %s11, 0
    %13 = vsyncpa [#allocation5], 0
    loop: start=0, step=1, limit=4
    $region2: #{tpu_custom_call.1} parent=1 // loop_pre_header
      _
    $region3: #{tpu_custom_call.1} parent=1 // loop_header
      %s15 = sphi 0, %s19
      %p16 = scmp.ge.s32.totalorder %s15, 4
      %s25 = sphi 0, %s27
      %s28 = sphi 0, %s25
      %s29 = sphi 0, %s28
      %s45 = sphi 0, %s29
      %s51 = sphi 0, %s53
      %s54 = sphi 0, %s51
      %s55 = sphi 0, %s54
      %s71 = sphi 0, %s55
      %s75 = sphi 0, %s75
      %s77 = sphi 0, %s75
      %s78 = sphi 0, %s77
      %s92 = sphi 0, %s78
    $region4: #{tpu_custom_call.1} parent=1 // loop_header_branch
      %18 = sbr.rel (%p16) target = $region8
    $region5: #{tpu_custom_call.1} parent=1 // loop_body
      %s20 = ssub.s32 %s15, 1
      %s21 = ssub.s32 %s15, 2
      %s22 = sadd.s32 %s15, 1
      %s23 = ssub.s32 %s15, %s22
      %p24 = scmp.eq.s32.totalorder %s23, 0
      %s26 = sadd.s32 %s25, 1
      %s27 = scalar_select %p24, %s25, %s26
      %p30 = pneg %p24
      %p31 = scmp.eq.s32.totalorder %s15, 1
      %p32 = por %p30, %p31
      %p33 = scmp.ne.s32.totalorder %s25, %s28
      %p34 = scmp.eq.s32.totalorder %s15, 0
      %p35 = por %p33, %p34
      %p36 = scmp.ne.s32.totalorder %s25, %s28
      %p37 = scmp.eq.s32.totalorder %s20, 1
      %p38 = por %p36, %p37
      %p39 = scmp.ne.s32.totalorder %s28, %s29
      %p40 = scmp.eq.s32.totalorder %s20, 0
      %p41 = por %p39, %p40
      %p42 = scmp.ne.s32.totalorder %s28, %s29
      %p43 = scmp.eq.s32.totalorder %s21, 1
      %p44 = por %p42, %p43
      %p46 = scmp.ne.s32.totalorder %s29, %s45
      %p47 = scmp.eq.s32.totalorder %s21, 0
      %p48 = por %p46, %p47
      %s49 = ssub.s32 %s15, %s22
      %p50 = scmp.eq.s32.totalorder %s49, 0
      %s52 = sadd.s32 %s51, 1
      %s53 = scalar_select %p50, %s51, %s52
      %p56 = pneg %p50
      %p57 = scmp.eq.s32.totalorder %s15, 1
      %p58 = por %p56, %p57
      %p59 = scmp.ne.s32.totalorder %s51, %s54
      %p60 = scmp.eq.s32.totalorder %s15, 0
      %p61 = por %p59, %p60
      %p62 = scmp.ne.s32.totalorder %s51, %s54
      %p63 = scmp.eq.s32.totalorder %s20, 1
      %p64 = por %p62, %p63
      %p65 = scmp.ne.s32.totalorder %s54, %s55
      %p66 = scmp.eq.s32.totalorder %s20, 0
      %p67 = por %p65, %p66
      %p68 = scmp.ne.s32.totalorder %s54, %s55
      %p69 = scmp.eq.s32.totalorder %s21, 1
      %p70 = por %p68, %p69
      %p72 = scmp.ne.s32.totalorder %s55, %s71
      %p73 = scmp.eq.s32.totalorder %s21, 0
      %p74 = por %p72, %p73
      %s76 = sadd.s32 %s75, 1
      %p79 = scmp.eq.s32.totalorder %s15, 1
      %p80 = scmp.ne.s32.totalorder %s75, %s77
      %p81 = scmp.eq.s32.totalorder %s15, 0
      %p82 = por %p80, %p81
      %p83 = scmp.ne.s32.totalorder %s75, %s77
      %p84 = scmp.eq.s32.totalorder %s20, 1
      %p85 = por %p83, %p84
      %p86 = scmp.ne.s32.totalorder %s77, %s78
      %p87 = scmp.eq.s32.totalorder %s20, 0
      %p88 = por %p86, %p87
      %p89 = scmp.ne.s32.totalorder %s77, %s78
      %p90 = scmp.eq.s32.totalorder %s21, 1
      %p91 = por %p89, %p90
      %p93 = scmp.ne.s32.totalorder %s78, %s92
      %p94 = scmp.eq.s32.totalorder %s21, 0
      %p95 = por %p93, %p94
      %p96 = scmp.le.s32.totalorder 1, %s15
      %p97 = scmp.lt.s32.totalorder %s15, 3
      %p98 = pnand %p96, %p97
      %p99 = pneg %p98
      // Predicated region
      $region9: #{tpu_custom_call.1} parent=5 // pred_check
        _
      $region10: #{tpu_custom_call.1} parent=5 // pred_check_branch
        %101 = sbr.rel (%p98) target = $region12
      $region11: #{tpu_custom_call.1} parent=5 // pred_region
        %s102 = ssub.s32 %s15, 1
      $region12: #{tpu_custom_call.1} parent=5 // pred_fallthru
        _
      %p103 = scmp.lt.s32.totalorder %s15, 2
      // Predicated region
      $region13: #{tpu_custom_call.1} parent=5 // pred_check
        %p104 = pneg %p103
      $region14: #{tpu_custom_call.1} parent=5 // pred_check_branch
        %106 = sbr.rel (%p104) target = $region16
      $region15: #{tpu_custom_call.1} parent=5 // pred_region
        // Predicated region
        $region17: #{tpu_custom_call.1} parent=15 // pred_check
          %p107 = pneg %p35
        $region18: #{tpu_custom_call.1} parent=15 // pred_check_branch
          %109 = sbr.rel (%p107) target = $region20
        $region19: #{tpu_custom_call.1} parent=15 // pred_region
          %s110 = sand.u32 %s25, 1
          %s111 = scalar_lea.sflag [#allocation4], %s110
          %s112 = sand.u32 %s25, 1
          %s113 = smul.addr %s112, 1024
          %s114 = scalar_lea.vmem [#allocation3], %s113
          %s115 = smul.u32 128, %s15
          %117 = vsyncadd %s111, 0
          %s118 = smul.addr %s115, 8
          %s119 = scalar_lea.hbm %s0, %s118
          %s120 = sshll.u32 %s119, 4
          %s121 = int_to_ptr.hbm [resolvable:$true] %s120
          %s122 = sshll.u32 %s114, 4
          %s123 = int_to_ptr.vmem [resolvable:$true] %s122
          %128 = dma.hbm_to_vmem [thread:$0]  %s121, 16384, %s123, %s111, 128, 128, 8
        $region20: #{tpu_custom_call.1} parent=15 // pred_fallthru
          _
        // Predicated region
        $region21: #{tpu_custom_call.1} parent=15 // pred_check
          %p129 = pneg %p61
        $region22: #{tpu_custom_call.1} parent=15 // pred_check_branch
          %131 = sbr.rel (%p129) target = $region24
        $region23: #{tpu_custom_call.1} parent=15 // pred_region
          %s132 = sand.u32 %s51, 1
          %s133 = scalar_lea.sflag [#allocation7], %s132
          %s134 = sand.u32 %s51, 1
          %s135 = smul.addr %s134, 1024
          %s136 = scalar_lea.vmem [#allocation6], %s135
          %s137 = smul.u32 128, %s15
          %139 = vsyncadd %s133, 0
          %s140 = smul.addr %s137, 8
          %s141 = scalar_lea.hbm %s1, %s140
          %s142 = sshll.u32 %s141, 4
          %s143 = int_to_ptr.hbm [resolvable:$true] %s142
          %s144 = sshll.u32 %s136, 4
          %s145 = int_to_ptr.vmem [resolvable:$true] %s144
          %150 = dma.hbm_to_vmem [thread:$0]  %s143, 16384, %s145, %s133, 128, 128, 8
        $region24: #{tpu_custom_call.1} parent=15 // pred_fallthru
          _
      $region16: #{tpu_custom_call.1} parent=5 // pred_fallthru
        _
      %p151 = scmp.le.s32.totalorder 1, %s15
      %p152 = scmp.lt.s32.totalorder %s15, 3
      %p153 = pnand %p151, %p152
      %p154 = pneg %p153
      // Predicated region
      $region25: #{tpu_custom_call.1} parent=5 // pred_check
        _
      $region26: #{tpu_custom_call.1} parent=5 // pred_check_branch
        %156 = sbr.rel (%p153) target = $region28
      $region27: #{tpu_custom_call.1} parent=5 // pred_region
        %s157 = ssub.s32 %s15, 1
        %s158 = sand.u32 %s28, 1
        %s159 = scalar_lea.sflag [#allocation4], %s158
        %s160 = sand.u32 %s28, 1
        %s161 = smul.addr %s160, 1024
        %s162 = scalar_lea.vmem [#allocation3], %s161
        // Predicated region
        $region29: #{tpu_custom_call.1} parent=27 // pred_check
          %p163 = pneg %p41
        $region30: #{tpu_custom_call.1} parent=27 // pred_check_branch
          %165 = sbr.rel (%p163) target = $region32
        $region31: #{tpu_custom_call.1} parent=27 // pred_region
          %167 = dma.done %s159, 16384
        $region32: #{tpu_custom_call.1} parent=27 // pred_fallthru
          _
        %s168 = sand.u32 %s54, 1
        %s169 = scalar_lea.sflag [#allocation7], %s168
        %s170 = sand.u32 %s54, 1
        %s171 = smul.addr %s170, 1024
        %s172 = scalar_lea.vmem [#allocation6], %s171
        // Predicated region
        $region33: #{tpu_custom_call.1} parent=27 // pred_check
          %p173 = pneg %p67
        $region34: #{tpu_custom_call.1} parent=27 // pred_check_branch
          %175 = sbr.rel (%p173) target = $region36
        $region35: #{tpu_custom_call.1} parent=27 // pred_region
          %177 = dma.done %s169, 16384
        $region36: #{tpu_custom_call.1} parent=27 // pred_fallthru
          _
        %s178 = sand.u32 %s28, 1
        %s179 = scalar_lea.sflag [#allocation4], %s178
        %s180 = sand.u32 %s28, 1
        %s181 = smul.addr %s180, 1024
        %s182 = scalar_lea.vmem [#allocation3], %s181
        %p183 = pneg %p41
        %p184 = pneg %p38
        %s185 = sand.u32 %s54, 1
        %s186 = scalar_lea.sflag [#allocation7], %s185
        %s187 = sand.u32 %s54, 1
        %s188 = smul.addr %s187, 1024
        %s189 = scalar_lea.vmem [#allocation6], %s188
        %p190 = pneg %p67
        %p191 = pneg %p64
        %p192 = pneg %p88
        %p193 = pneg %p85
        %s194 = smul.u32 128, %s20
        %s195 = smul.u32 128, %s20
        %p196 = scmp.eq.s32.totalorder %s20, 0
        // Predicated region
        $region37: #{tpu_custom_call.1} parent=27 // pred_check
          %p197 = pneg %p196
        $region38: #{tpu_custom_call.1} parent=27 // pred_check_branch
          %199 = sbr.rel (%p197) target = $region40
        $region39: #{tpu_custom_call.1} parent=27 // pred_region
          %s200 = scalar_lea.smem [#allocation2], 0
          %201 = sst [smem:[%s200]] 0.0
        $region40: #{tpu_custom_call.1} parent=27 // pred_fallthru
          _
        %s202 = sld [smem:[#allocation2]]
        %v203 = vld [vmem:[%s162] sm:$0xff]
        %v204 = vld [vmem:[%s162 + $0x8] sm:$0xff]
        %v205 = vld [vmem:[%s162 + $0x10] sm:$0xff]
        %v206 = vld [vmem:[%s162 + $0x18] sm:$0xff]
        %v207 = vld [vmem:[%s162 + $0x20] sm:$0xff]
        %v208 = vld [vmem:[%s162 + $0x28] sm:$0xff]
        %v209 = vld [vmem:[%s162 + $0x30] sm:$0xff]
        %v210 = vld [vmem:[%s162 + $0x38] sm:$0xff]
        %v211 = vld [vmem:[%s162 + $0x40] sm:$0xff]
        %v212 = vld [vmem:[%s162 + $0x48] sm:$0xff]
        %v213 = vld [vmem:[%s162 + $0x50] sm:$0xff]
        %v214 = vld [vmem:[%s162 + $0x58] sm:$0xff]
        %v215 = vld [vmem:[%s162 + $0x60] sm:$0xff]
        %v216 = vld [vmem:[%s162 + $0x68] sm:$0xff]
        %v217 = vld [vmem:[%s162 + $0x70] sm:$0xff]
        %v218 = vld [vmem:[%s162 + $0x78] sm:$0xff]
        %v219 = vld [vmem:[%s162 + $0x80] sm:$0xff]
        %v220 = vld [vmem:[%s162 + $0x88] sm:$0xff]
        %v221 = vld [vmem:[%s162 + $0x90] sm:$0xff]
        %v222 = vld [vmem:[%s162 + $0x98] sm:$0xff]
        %v223 = vld [vmem:[%s162 + $0xa0] sm:$0xff]
        %v224 = vld [vmem:[%s162 + $0xa8] sm:$0xff]
        %v225 = vld [vmem:[%s162 + $0xb0] sm:$0xff]
        %v226 = vld [vmem:[%s162 + $0xb8] sm:$0xff]
        %v227 = vld [vmem:[%s162 + $0xc0] sm:$0xff]
        %v228 = vld [vmem:[%s162 + $0xc8] sm:$0xff]
        %v229 = vld [vmem:[%s162 + $0xd0] sm:$0xff]
        %v230 = vld [vmem:[%s162 + $0xd8] sm:$0xff]
        %v231 = vld [vmem:[%s162 + $0xe0] sm:$0xff]
        %v232 = vld [vmem:[%s162 + $0xe8] sm:$0xff]
        %v233 = vld [vmem:[%s162 + $0xf0] sm:$0xff]
        %v234 = vld [vmem:[%s162 + $0xf8] sm:$0xff]
        %v235 = vld [vmem:[%s162 + $0x100] sm:$0xff]
        %v236 = vld [vmem:[%s162 + $0x108] sm:$0xff]
        %v237 = vld [vmem:[%s162 + $0x110] sm:$0xff]
        %v238 = vld [vmem:[%s162 + $0x118] sm:$0xff]
        %v239 = vld [vmem:[%s162 + $0x120] sm:$0xff]
        %v240 = vld [vmem:[%s162 + $0x128] sm:$0xff]
        %v241 = vld [vmem:[%s162 + $0x130] sm:$0xff]
        %v242 = vld [vmem:[%s162 + $0x138] sm:$0xff]
        %v243 = vld [vmem:[%s162 + $0x140] sm:$0xff]
        %v244 = vld [vmem:[%s162 + $0x148] sm:$0xff]
        %v245 = vld [vmem:[%s162 + $0x150] sm:$0xff]
        %v246 = vld [vmem:[%s162 + $0x158] sm:$0xff]
        %v247 = vld [vmem:[%s162 + $0x160] sm:$0xff]
        %v248 = vld [vmem:[%s162 + $0x168] sm:$0xff]
        %v249 = vld [vmem:[%s162 + $0x170] sm:$0xff]
        %v250 = vld [vmem:[%s162 + $0x178] sm:$0xff]
        %v251 = vld [vmem:[%s162 + $0x180] sm:$0xff]
        %v252 = vld [vmem:[%s162 + $0x188] sm:$0xff]
        %v253 = vld [vmem:[%s162 + $0x190] sm:$0xff]
        %v254 = vld [vmem:[%s162 + $0x198] sm:$0xff]
        %v255 = vld [vmem:[%s162 + $0x1a0] sm:$0xff]
        %v256 = vld [vmem:[%s162 + $0x1a8] sm:$0xff]
        %v257 = vld [vmem:[%s162 + $0x1b0] sm:$0xff]
        %v258 = vld [vmem:[%s162 + $0x1b8] sm:$0xff]
        %v259 = vld [vmem:[%s162 + $0x1c0] sm:$0xff]
        %v260 = vld [vmem:[%s162 + $0x1c8] sm:$0xff]
        %v261 = vld [vmem:[%s162 + $0x1d0] sm:$0xff]
        %v262 = vld [vmem:[%s162 + $0x1d8] sm:$0xff]
        %v263 = vld [vmem:[%s162 + $0x1e0] sm:$0xff]
        %v264 = vld [vmem:[%s162 + $0x1e8] sm:$0xff]
        %v265 = vld [vmem:[%s162 + $0x1f0] sm:$0xff]
        %v266 = vld [vmem:[%s162 + $0x1f8] sm:$0xff]
        %v267 = vld [vmem:[%s162 + $0x200] sm:$0xff]
        %v268 = vld [vmem:[%s162 + $0x208] sm:$0xff]
        %v269 = vld [vmem:[%s162 + $0x210] sm:$0xff]
        %v270 = vld [vmem:[%s162 + $0x218] sm:$0xff]
        %v271 = vld [vmem:[%s162 + $0x220] sm:$0xff]
        %v272 = vld [vmem:[%s162 + $0x228] sm:$0xff]
        %v273 = vld [vmem:[%s162 + $0x230] sm:$0xff]
        %v274 = vld [vmem:[%s162 + $0x238] sm:$0xff]
        %v275 = vld [vmem:[%s162 + $0x240] sm:$0xff]
        %v276 = vld [vmem:[%s162 + $0x248] sm:$0xff]
        %v277 = vld [vmem:[%s162 + $0x250] sm:$0xff]
        %v278 = vld [vmem:[%s162 + $0x258] sm:$0xff]
        %v279 = vld [vmem:[%s162 + $0x260] sm:$0xff]
        %v280 = vld [vmem:[%s162 + $0x268] sm:$0xff]
        %v281 = vld [vmem:[%s162 + $0x270] sm:$0xff]
        %v282 = vld [vmem:[%s162 + $0x278] sm:$0xff]
        %v283 = vld [vmem:[%s162 + $0x280] sm:$0xff]
        %v284 = vld [vmem:[%s162 + $0x288] sm:$0xff]
        %v285 = vld [vmem:[%s162 + $0x290] sm:$0xff]
        %v286 = vld [vmem:[%s162 + $0x298] sm:$0xff]
        %v287 = vld [vmem:[%s162 + $0x2a0] sm:$0xff]
        %v288 = vld [vmem:[%s162 + $0x2a8] sm:$0xff]
        %v289 = vld [vmem:[%s162 + $0x2b0] sm:$0xff]
        %v290 = vld [vmem:[%s162 + $0x2b8] sm:$0xff]
        %v291 = vld [vmem:[%s162 + $0x2c0] sm:$0xff]
        %v292 = vld [vmem:[%s162 + $0x2c8] sm:$0xff]
        %v293 = vld [vmem:[%s162 + $0x2d0] sm:$0xff]
        %v294 = vld [vmem:[%s162 + $0x2d8] sm:$0xff]
        %v295 = vld [vmem:[%s162 + $0x2e0] sm:$0xff]
        %v296 = vld [vmem:[%s162 + $0x2e8] sm:$0xff]
        %v297 = vld [vmem:[%s162 + $0x2f0] sm:$0xff]
        %v298 = vld [vmem:[%s162 + $0x2f8] sm:$0xff]
        %v299 = vld [vmem:[%s162 + $0x300] sm:$0xff]
        %v300 = vld [vmem:[%s162 + $0x308] sm:$0xff]
        %v301 = vld [vmem:[%s162 + $0x310] sm:$0xff]
        %v302 = vld [vmem:[%s162 + $0x318] sm:$0xff]
        %v303 = vld [vmem:[%s162 + $0x320] sm:$0xff]
        %v304 = vld [vmem:[%s162 + $0x328] sm:$0xff]
        %v305 = vld [vmem:[%s162 + $0x330] sm:$0xff]
        %v306 = vld [vmem:[%s162 + $0x338] sm:$0xff]
        %v307 = vld [vmem:[%s162 + $0x340] sm:$0xff]
        %v308 = vld [vmem:[%s162 + $0x348] sm:$0xff]
        %v309 = vld [vmem:[%s162 + $0x350] sm:$0xff]
        %v310 = vld [vmem:[%s162 + $0x358] sm:$0xff]
        %v311 = vld [vmem:[%s162 + $0x360] sm:$0xff]
        %v312 = vld [vmem:[%s162 + $0x368] sm:$0xff]
        %v313 = vld [vmem:[%s162 + $0x370] sm:$0xff]
        %v314 = vld [vmem:[%s162 + $0x378] sm:$0xff]
        %v315 = vld [vmem:[%s162 + $0x380] sm:$0xff]
        %v316 = vld [vmem:[%s162 + $0x388] sm:$0xff]
        %v317 = vld [vmem:[%s162 + $0x390] sm:$0xff]
        %v318 = vld [vmem:[%s162 + $0x398] sm:$0xff]
        %v319 = vld [vmem:[%s162 + $0x3a0] sm:$0xff]
        %v320 = vld [vmem:[%s162 + $0x3a8] sm:$0xff]
        %v321 = vld [vmem:[%s162 + $0x3b0] sm:$0xff]
        %v322 = vld [vmem:[%s162 + $0x3b8] sm:$0xff]
        %v323 = vld [vmem:[%s162 + $0x3c0] sm:$0xff]
        %v324 = vld [vmem:[%s162 + $0x3c8] sm:$0xff]
        %v325 = vld [vmem:[%s162 + $0x3d0] sm:$0xff]
        %v326 = vld [vmem:[%s162 + $0x3d8] sm:$0xff]
        %v327 = vld [vmem:[%s162 + $0x3e0] sm:$0xff]
        %v328 = vld [vmem:[%s162 + $0x3e8] sm:$0xff]
        %v329 = vld [vmem:[%s162 + $0x3f0] sm:$0xff]
        %v330 = vld [vmem:[%s162 + $0x3f8] sm:$0xff]
        %v331 = vld [vmem:[%s172] sm:$0xff]
        %v332 = vld [vmem:[%s172 + $0x8] sm:$0xff]
        %v333 = vld [vmem:[%s172 + $0x10] sm:$0xff]
        %v334 = vld [vmem:[%s172 + $0x18] sm:$0xff]
        %v335 = vld [vmem:[%s172 + $0x20] sm:$0xff]
        %v336 = vld [vmem:[%s172 + $0x28] sm:$0xff]
        %v337 = vld [vmem:[%s172 + $0x30] sm:$0xff]
        %v338 = vld [vmem:[%s172 + $0x38] sm:$0xff]
        %v339 = vld [vmem:[%s172 + $0x40] sm:$0xff]
        %v340 = vld [vmem:[%s172 + $0x48] sm:$0xff]
        %v341 = vld [vmem:[%s172 + $0x50] sm:$0xff]
        %v342 = vld [vmem:[%s172 + $0x58] sm:$0xff]
        %v343 = vld [vmem:[%s172 + $0x60] sm:$0xff]
        %v344 = vld [vmem:[%s172 + $0x68] sm:$0xff]
        %v345 = vld [vmem:[%s172 + $0x70] sm:$0xff]
        %v346 = vld [vmem:[%s172 + $0x78] sm:$0xff]
        %v347 = vld [vmem:[%s172 + $0x80] sm:$0xff]
        %v348 = vld [vmem:[%s172 + $0x88] sm:$0xff]
        %v349 = vld [vmem:[%s172 + $0x90] sm:$0xff]
        %v350 = vld [vmem:[%s172 + $0x98] sm:$0xff]
        %v351 = vld [vmem:[%s172 + $0xa0] sm:$0xff]
        %v352 = vld [vmem:[%s172 + $0xa8] sm:$0xff]
        %v353 = vld [vmem:[%s172 + $0xb0] sm:$0xff]
        %v354 = vld [vmem:[%s172 + $0xb8] sm:$0xff]
        %v355 = vld [vmem:[%s172 + $0xc0] sm:$0xff]
        %v356 = vld [vmem:[%s172 + $0xc8] sm:$0xff]
        %v357 = vld [vmem:[%s172 + $0xd0] sm:$0xff]
        %v358 = vld [vmem:[%s172 + $0xd8] sm:$0xff]
        %v359 = vld [vmem:[%s172 + $0xe0] sm:$0xff]
        %v360 = vld [vmem:[%s172 + $0xe8] sm:$0xff]
        %v361 = vld [vmem:[%s172 + $0xf0] sm:$0xff]
        %v362 = vld [vmem:[%s172 + $0xf8] sm:$0xff]
        %v363 = vld [vmem:[%s172 + $0x100] sm:$0xff]
        %v364 = vld [vmem:[%s172 + $0x108] sm:$0xff]
        %v365 = vld [vmem:[%s172 + $0x110] sm:$0xff]
        %v366 = vld [vmem:[%s172 + $0x118] sm:$0xff]
        %v367 = vld [vmem:[%s172 + $0x120] sm:$0xff]
        %v368 = vld [vmem:[%s172 + $0x128] sm:$0xff]
        %v369 = vld [vmem:[%s172 + $0x130] sm:$0xff]
        %v370 = vld [vmem:[%s172 + $0x138] sm:$0xff]
        %v371 = vld [vmem:[%s172 + $0x140] sm:$0xff]
        %v372 = vld [vmem:[%s172 + $0x148] sm:$0xff]
        %v373 = vld [vmem:[%s172 + $0x150] sm:$0xff]
        %v374 = vld [vmem:[%s172 + $0x158] sm:$0xff]
        %v375 = vld [vmem:[%s172 + $0x160] sm:$0xff]
        %v376 = vld [vmem:[%s172 + $0x168] sm:$0xff]
        %v377 = vld [vmem:[%s172 + $0x170] sm:$0xff]
        %v378 = vld [vmem:[%s172 + $0x178] sm:$0xff]
        %v379 = vld [vmem:[%s172 + $0x180] sm:$0xff]
        %v380 = vld [vmem:[%s172 + $0x188] sm:$0xff]
        %v381 = vld [vmem:[%s172 + $0x190] sm:$0xff]
        %v382 = vld [vmem:[%s172 + $0x198] sm:$0xff]
        %v383 = vld [vmem:[%s172 + $0x1a0] sm:$0xff]
        %v384 = vld [vmem:[%s172 + $0x1a8] sm:$0xff]
        %v385 = vld [vmem:[%s172 + $0x1b0] sm:$0xff]
        %v386 = vld [vmem:[%s172 + $0x1b8] sm:$0xff]
        %v387 = vld [vmem:[%s172 + $0x1c0] sm:$0xff]
        %v388 = vld [vmem:[%s172 + $0x1c8] sm:$0xff]
        %v389 = vld [vmem:[%s172 + $0x1d0] sm:$0xff]
        %v390 = vld [vmem:[%s172 + $0x1d8] sm:$0xff]
        %v391 = vld [vmem:[%s172 + $0x1e0] sm:$0xff]
        %v392 = vld [vmem:[%s172 + $0x1e8] sm:$0xff]
        %v393 = vld [vmem:[%s172 + $0x1f0] sm:$0xff]
        %v394 = vld [vmem:[%s172 + $0x1f8] sm:$0xff]
        %v395 = vld [vmem:[%s172 + $0x200] sm:$0xff]
        %v396 = vld [vmem:[%s172 + $0x208] sm:$0xff]
        %v397 = vld [vmem:[%s172 + $0x210] sm:$0xff]
        %v398 = vld [vmem:[%s172 + $0x218] sm:$0xff]
        %v399 = vld [vmem:[%s172 + $0x220] sm:$0xff]
        %v400 = vld [vmem:[%s172 + $0x228] sm:$0xff]
        %v401 = vld [vmem:[%s172 + $0x230] sm:$0xff]
        %v402 = vld [vmem:[%s172 + $0x238] sm:$0xff]
        %v403 = vld [vmem:[%s172 + $0x240] sm:$0xff]
        %v404 = vld [vmem:[%s172 + $0x248] sm:$0xff]
        %v405 = vld [vmem:[%s172 + $0x250] sm:$0xff]
        %v406 = vld [vmem:[%s172 + $0x258] sm:$0xff]
        %v407 = vld [vmem:[%s172 + $0x260] sm:$0xff]
        %v408 = vld [vmem:[%s172 + $0x268] sm:$0xff]
        %v409 = vld [vmem:[%s172 + $0x270] sm:$0xff]
        %v410 = vld [vmem:[%s172 + $0x278] sm:$0xff]
        %v411 = vld [vmem:[%s172 + $0x280] sm:$0xff]
        %v412 = vld [vmem:[%s172 + $0x288] sm:$0xff]
        %v413 = vld [vmem:[%s172 + $0x290] sm:$0xff]
        %v414 = vld [vmem:[%s172 + $0x298] sm:$0xff]
        %v415 = vld [vmem:[%s172 + $0x2a0] sm:$0xff]
        %v416 = vld [vmem:[%s172 + $0x2a8] sm:$0xff]
        %v417 = vld [vmem:[%s172 + $0x2b0] sm:$0xff]
        %v418 = vld [vmem:[%s172 + $0x2b8] sm:$0xff]
        %v419 = vld [vmem:[%s172 + $0x2c0] sm:$0xff]
        %v420 = vld [vmem:[%s172 + $0x2c8] sm:$0xff]
        %v421 = vld [vmem:[%s172 + $0x2d0] sm:$0xff]
        %v422 = vld [vmem:[%s172 + $0x2d8] sm:$0xff]
        %v423 = vld [vmem:[%s172 + $0x2e0] sm:$0xff]
        %v424 = vld [vmem:[%s172 + $0x2e8] sm:$0xff]
        %v425 = vld [vmem:[%s172 + $0x2f0] sm:$0xff]
        %v426 = vld [vmem:[%s172 + $0x2f8] sm:$0xff]
        %v427 = vld [vmem:[%s172 + $0x300] sm:$0xff]
        %v428 = vld [vmem:[%s172 + $0x308] sm:$0xff]
        %v429 = vld [vmem:[%s172 + $0x310] sm:$0xff]
        %v430 = vld [vmem:[%s172 + $0x318] sm:$0xff]
        %v431 = vld [vmem:[%s172 + $0x320] sm:$0xff]
        %v432 = vld [vmem:[%s172 + $0x328] sm:$0xff]
        %v433 = vld [vmem:[%s172 + $0x330] sm:$0xff]
        %v434 = vld [vmem:[%s172 + $0x338] sm:$0xff]
        %v435 = vld [vmem:[%s172 + $0x340] sm:$0xff]
        %v436 = vld [vmem:[%s172 + $0x348] sm:$0xff]
        %v437 = vld [vmem:[%s172 + $0x350] sm:$0xff]
        %v438 = vld [vmem:[%s172 + $0x358] sm:$0xff]
        %v439 = vld [vmem:[%s172 + $0x360] sm:$0xff]
        %v440 = vld [vmem:[%s172 + $0x368] sm:$0xff]
        %v441 = vld [vmem:[%s172 + $0x370] sm:$0xff]
        %v442 = vld [vmem:[%s172 + $0x378] sm:$0xff]
        %v443 = vld [vmem:[%s172 + $0x380] sm:$0xff]
        %v444 = vld [vmem:[%s172 + $0x388] sm:$0xff]
        %v445 = vld [vmem:[%s172 + $0x390] sm:$0xff]
        %v446 = vld [vmem:[%s172 + $0x398] sm:$0xff]
        %v447 = vld [vmem:[%s172 + $0x3a0] sm:$0xff]
        %v448 = vld [vmem:[%s172 + $0x3a8] sm:$0xff]
        %v449 = vld [vmem:[%s172 + $0x3b0] sm:$0xff]
        %v450 = vld [vmem:[%s172 + $0x3b8] sm:$0xff]
        %v451 = vld [vmem:[%s172 + $0x3c0] sm:$0xff]
        %v452 = vld [vmem:[%s172 + $0x3c8] sm:$0xff]
        %v453 = vld [vmem:[%s172 + $0x3d0] sm:$0xff]
        %v454 = vld [vmem:[%s172 + $0x3d8] sm:$0xff]
        %v455 = vld [vmem:[%s172 + $0x3e0] sm:$0xff]
        %v456 = vld [vmem:[%s172 + $0x3e8] sm:$0xff]
        %v457 = vld [vmem:[%s172 + $0x3f0] sm:$0xff]
        %v458 = vld [vmem:[%s172 + $0x3f8] sm:$0xff]
        %v459 = vsub.f32 %v203, %v331
        %v460 = vsub.f32 %v204, %v332
        %v461 = vsub.f32 %v205, %v333
        %v462 = vsub.f32 %v206, %v334
        %v463 = vsub.f32 %v207, %v335
        %v464 = vsub.f32 %v208, %v336
        %v465 = vsub.f32 %v209, %v337
        %v466 = vsub.f32 %v210, %v338
        %v467 = vsub.f32 %v211, %v339
        %v468 = vsub.f32 %v212, %v340
        %v469 = vsub.f32 %v213, %v341
        %v470 = vsub.f32 %v214, %v342
        %v471 = vsub.f32 %v215, %v343
        %v472 = vsub.f32 %v216, %v344
        %v473 = vsub.f32 %v217, %v345
        %v474 = vsub.f32 %v218, %v346
        %v475 = vsub.f32 %v219, %v347
        %v476 = vsub.f32 %v220, %v348
        %v477 = vsub.f32 %v221, %v349
        %v478 = vsub.f32 %v222, %v350
        %v479 = vsub.f32 %v223, %v351
        %v480 = vsub.f32 %v224, %v352
        %v481 = vsub.f32 %v225, %v353
        %v482 = vsub.f32 %v226, %v354
        %v483 = vsub.f32 %v227, %v355
        %v484 = vsub.f32 %v228, %v356
        %v485 = vsub.f32 %v229, %v357
        %v486 = vsub.f32 %v230, %v358
        %v487 = vsub.f32 %v231, %v359
        %v488 = vsub.f32 %v232, %v360
        %v489 = vsub.f32 %v233, %v361
        %v490 = vsub.f32 %v234, %v362
        %v491 = vsub.f32 %v235, %v363
        %v492 = vsub.f32 %v236, %v364
        %v493 = vsub.f32 %v237, %v365
        %v494 = vsub.f32 %v238, %v366
        %v495 = vsub.f32 %v239, %v367
        %v496 = vsub.f32 %v240, %v368
        %v497 = vsub.f32 %v241, %v369
        %v498 = vsub.f32 %v242, %v370
        %v499 = vsub.f32 %v243, %v371
        %v500 = vsub.f32 %v244, %v372
        %v501 = vsub.f32 %v245, %v373
        %v502 = vsub.f32 %v246, %v374
        %v503 = vsub.f32 %v247, %v375
        %v504 = vsub.f32 %v248, %v376
        %v505 = vsub.f32 %v249, %v377
        %v506 = vsub.f32 %v250, %v378
        %v507 = vsub.f32 %v251, %v379
        %v508 = vsub.f32 %v252, %v380
        %v509 = vsub.f32 %v253, %v381
        %v510 = vsub.f32 %v254, %v382
        %v511 = vsub.f32 %v255, %v383
        %v512 = vsub.f32 %v256, %v384
        %v513 = vsub.f32 %v257, %v385
        %v514 = vsub.f32 %v258, %v386
        %v515 = vsub.f32 %v259, %v387
        %v516 = vsub.f32 %v260, %v388
        %v517 = vsub.f32 %v261, %v389
        %v518 = vsub.f32 %v262, %v390
        %v519 = vsub.f32 %v263, %v391
        %v520 = vsub.f32 %v264, %v392
        %v521 = vsub.f32 %v265, %v393
        %v522 = vsub.f32 %v266, %v394
        %v523 = vsub.f32 %v267, %v395
        %v524 = vsub.f32 %v268, %v396
        %v525 = vsub.f32 %v269, %v397
        %v526 = vsub.f32 %v270, %v398
        %v527 = vsub.f32 %v271, %v399
        %v528 = vsub.f32 %v272, %v400
        %v529 = vsub.f32 %v273, %v401
        %v530 = vsub.f32 %v274, %v402
        %v531 = vsub.f32 %v275, %v403
        %v532 = vsub.f32 %v276, %v404
        %v533 = vsub.f32 %v277, %v405
        %v534 = vsub.f32 %v278, %v406
        %v535 = vsub.f32 %v279, %v407
        %v536 = vsub.f32 %v280, %v408
        %v537 = vsub.f32 %v281, %v409
        %v538 = vsub.f32 %v282, %v410
        %v539 = vsub.f32 %v283, %v411
        %v540 = vsub.f32 %v284, %v412
        %v541 = vsub.f32 %v285, %v413
        %v542 = vsub.f32 %v286, %v414
        %v543 = vsub.f32 %v287, %v415
        %v544 = vsub.f32 %v288, %v416
        %v545 = vsub.f32 %v289, %v417
        %v546 = vsub.f32 %v290, %v418
        %v547 = vsub.f32 %v291, %v419
        %v548 = vsub.f32 %v292, %v420
        %v549 = vsub.f32 %v293, %v421
        %v550 = vsub.f32 %v294, %v422
        %v551 = vsub.f32 %v295, %v423
        %v552 = vsub.f32 %v296, %v424
        %v553 = vsub.f32 %v297, %v425
        %v554 = vsub.f32 %v298, %v426
        %v555 = vsub.f32 %v299, %v427
        %v556 = vsub.f32 %v300, %v428
        %v557 = vsub.f32 %v301, %v429
        %v558 = vsub.f32 %v302, %v430
        %v559 = vsub.f32 %v303, %v431
        %v560 = vsub.f32 %v304, %v432
        %v561 = vsub.f32 %v305, %v433
        %v562 = vsub.f32 %v306, %v434
        %v563 = vsub.f32 %v307, %v435
        %v564 = vsub.f32 %v308, %v436
        %v565 = vsub.f32 %v309, %v437
        %v566 = vsub.f32 %v310, %v438
        %v567 = vsub.f32 %v311, %v439
        %v568 = vsub.f32 %v312, %v440
        %v569 = vsub.f32 %v313, %v441
        %v570 = vsub.f32 %v314, %v442
        %v571 = vsub.f32 %v315, %v443
        %v572 = vsub.f32 %v316, %v444
        %v573 = vsub.f32 %v317, %v445
        %v574 = vsub.f32 %v318, %v446
        %v575 = vsub.f32 %v319, %v447
        %v576 = vsub.f32 %v320, %v448
        %v577 = vsub.f32 %v321, %v449
        %v578 = vsub.f32 %v322, %v450
        %v579 = vsub.f32 %v323, %v451
        %v580 = vsub.f32 %v324, %v452
        %v581 = vsub.f32 %v325, %v453
        %v582 = vsub.f32 %v326, %v454
        %v583 = vsub.f32 %v327, %v455
        %v584 = vsub.f32 %v328, %v456
        %v585 = vsub.f32 %v329, %v457
        %v586 = vsub.f32 %v330, %v458
        %v587 = vand.u32 2147483647, %v459
        %v588 = vand.u32 2147483647, %v460
        %v589 = vand.u32 2147483647, %v461
        %v590 = vand.u32 2147483647, %v462
        %v591 = vand.u32 2147483647, %v463
        %v592 = vand.u32 2147483647, %v464
        %v593 = vand.u32 2147483647, %v465
        %v594 = vand.u32 2147483647, %v466
        %v595 = vand.u32 2147483647, %v467
        %v596 = vand.u32 2147483647, %v468
        %v597 = vand.u32 2147483647, %v469
        %v598 = vand.u32 2147483647, %v470
        %v599 = vand.u32 2147483647, %v471
        %v600 = vand.u32 2147483647, %v472
        %v601 = vand.u32 2147483647, %v473
        %v602 = vand.u32 2147483647, %v474
        %v603 = vand.u32 2147483647, %v475
        %v604 = vand.u32 2147483647, %v476
        %v605 = vand.u32 2147483647, %v477
        %v606 = vand.u32 2147483647, %v478
        %v607 = vand.u32 2147483647, %v479
        %v608 = vand.u32 2147483647, %v480
        %v609 = vand.u32 2147483647, %v481
        %v610 = vand.u32 2147483647, %v482
        %v611 = vand.u32 2147483647, %v483
        %v612 = vand.u32 2147483647, %v484
        %v613 = vand.u32 2147483647, %v485
        %v614 = vand.u32 2147483647, %v486
        %v615 = vand.u32 2147483647, %v487
        %v616 = vand.u32 2147483647, %v488
        %v617 = vand.u32 2147483647, %v489
        %v618 = vand.u32 2147483647, %v490
        %v619 = vand.u32 2147483647, %v491
        %v620 = vand.u32 2147483647, %v492
        %v621 = vand.u32 2147483647, %v493
        %v622 = vand.u32 2147483647, %v494
        %v623 = vand.u32 2147483647, %v495
        %v624 = vand.u32 2147483647, %v496
        %v625 = vand.u32 2147483647, %v497
        %v626 = vand.u32 2147483647, %v498
        %v627 = vand.u32 2147483647, %v499
        %v628 = vand.u32 2147483647, %v500
        %v629 = vand.u32 2147483647, %v501
        %v630 = vand.u32 2147483647, %v502
        %v631 = vand.u32 2147483647, %v503
        %v632 = vand.u32 2147483647, %v504
        %v633 = vand.u32 2147483647, %v505
        %v634 = vand.u32 2147483647, %v506
        %v635 = vand.u32 2147483647, %v507
        %v636 = vand.u32 2147483647, %v508
        %v637 = vand.u32 2147483647, %v509
        %v638 = vand.u32 2147483647, %v510
        %v639 = vand.u32 2147483647, %v511
        %v640 = vand.u32 2147483647, %v512
        %v641 = vand.u32 2147483647, %v513
        %v642 = vand.u32 2147483647, %v514
        %v643 = vand.u32 2147483647, %v515
        %v644 = vand.u32 2147483647, %v516
        %v645 = vand.u32 2147483647, %v517
        %v646 = vand.u32 2147483647, %v518
        %v647 = vand.u32 2147483647, %v519
        %v648 = vand.u32 2147483647, %v520
        %v649 = vand.u32 2147483647, %v521
        %v650 = vand.u32 2147483647, %v522
        %v651 = vand.u32 2147483647, %v523
        %v652 = vand.u32 2147483647, %v524
        %v653 = vand.u32 2147483647, %v525
        %v654 = vand.u32 2147483647, %v526
        %v655 = vand.u32 2147483647, %v527
        %v656 = vand.u32 2147483647, %v528
        %v657 = vand.u32 2147483647, %v529
        %v658 = vand.u32 2147483647, %v530
        %v659 = vand.u32 2147483647, %v531
        %v660 = vand.u32 2147483647, %v532
        %v661 = vand.u32 2147483647, %v533
        %v662 = vand.u32 2147483647, %v534
        %v663 = vand.u32 2147483647, %v535
        %v664 = vand.u32 2147483647, %v536
        %v665 = vand.u32 2147483647, %v537
        %v666 = vand.u32 2147483647, %v538
        %v667 = vand.u32 2147483647, %v539
        %v668 = vand.u32 2147483647, %v540
        %v669 = vand.u32 2147483647, %v541
        %v670 = vand.u32 2147483647, %v542
        %v671 = vand.u32 2147483647, %v543
        %v672 = vand.u32 2147483647, %v544
        %v673 = vand.u32 2147483647, %v545
        %v674 = vand.u32 2147483647, %v546
        %v675 = vand.u32 2147483647, %v547
        %v676 = vand.u32 2147483647, %v548
        %v677 = vand.u32 2147483647, %v549
        %v678 = vand.u32 2147483647, %v550
        %v679 = vand.u32 2147483647, %v551
        %v680 = vand.u32 2147483647, %v552
        %v681 = vand.u32 2147483647, %v553
        %v682 = vand.u32 2147483647, %v554
        %v683 = vand.u32 2147483647, %v555
        %v684 = vand.u32 2147483647, %v556
        %v685 = vand.u32 2147483647, %v557
        %v686 = vand.u32 2147483647, %v558
        %v687 = vand.u32 2147483647, %v559
        %v688 = vand.u32 2147483647, %v560
        %v689 = vand.u32 2147483647, %v561
        %v690 = vand.u32 2147483647, %v562
        %v691 = vand.u32 2147483647, %v563
        %v692 = vand.u32 2147483647, %v564
        %v693 = vand.u32 2147483647, %v565
        %v694 = vand.u32 2147483647, %v566
        %v695 = vand.u32 2147483647, %v567
        %v696 = vand.u32 2147483647, %v568
        %v697 = vand.u32 2147483647, %v569
        %v698 = vand.u32 2147483647, %v570
        %v699 = vand.u32 2147483647, %v571
        %v700 = vand.u32 2147483647, %v572
        %v701 = vand.u32 2147483647, %v573
        %v702 = vand.u32 2147483647, %v574
        %v703 = vand.u32 2147483647, %v575
        %v704 = vand.u32 2147483647, %v576
        %v705 = vand.u32 2147483647, %v577
        %v706 = vand.u32 2147483647, %v578
        %v707 = vand.u32 2147483647, %v579
        %v708 = vand.u32 2147483647, %v580
        %v709 = vand.u32 2147483647, %v581
        %v710 = vand.u32 2147483647, %v582
        %v711 = vand.u32 2147483647, %v583
        %v712 = vand.u32 2147483647, %v584
        %v713 = vand.u32 2147483647, %v585
        %v714 = vand.u32 2147483647, %v586
        %vm715 = vcmp.lt.f32.partialorder %v587, 1.0
        %vm716 = vcmp.lt.f32.partialorder %v588, 1.0
        %vm717 = vcmp.lt.f32.partialorder %v589, 1.0
        %vm718 = vcmp.lt.f32.partialorder %v590, 1.0
        %vm719 = vcmp.lt.f32.partialorder %v591, 1.0
        %vm720 = vcmp.lt.f32.partialorder %v592, 1.0
        %vm721 = vcmp.lt.f32.partialorder %v593, 1.0
        %vm722 = vcmp.lt.f32.partialorder %v594, 1.0
        %vm723 = vcmp.lt.f32.partialorder %v595, 1.0
        %vm724 = vcmp.lt.f32.partialorder %v596, 1.0
        %vm725 = vcmp.lt.f32.partialorder %v597, 1.0
        %vm726 = vcmp.lt.f32.partialorder %v598, 1.0
        %vm727 = vcmp.lt.f32.partialorder %v599, 1.0
        %vm728 = vcmp.lt.f32.partialorder %v600, 1.0
        %vm729 = vcmp.lt.f32.partialorder %v601, 1.0
        %vm730 = vcmp.lt.f32.partialorder %v602, 1.0
        %vm731 = vcmp.lt.f32.partialorder %v603, 1.0
        %vm732 = vcmp.lt.f32.partialorder %v604, 1.0
        %vm733 = vcmp.lt.f32.partialorder %v605, 1.0
        %vm734 = vcmp.lt.f32.partialorder %v606, 1.0
        %vm735 = vcmp.lt.f32.partialorder %v607, 1.0
        %vm736 = vcmp.lt.f32.partialorder %v608, 1.0
        %vm737 = vcmp.lt.f32.partialorder %v609, 1.0
        %vm738 = vcmp.lt.f32.partialorder %v610, 1.0
        %vm739 = vcmp.lt.f32.partialorder %v611, 1.0
        %vm740 = vcmp.lt.f32.partialorder %v612, 1.0
        %vm741 = vcmp.lt.f32.partialorder %v613, 1.0
        %vm742 = vcmp.lt.f32.partialorder %v614, 1.0
        %vm743 = vcmp.lt.f32.partialorder %v615, 1.0
        %vm744 = vcmp.lt.f32.partialorder %v616, 1.0
        %vm745 = vcmp.lt.f32.partialorder %v617, 1.0
        %vm746 = vcmp.lt.f32.partialorder %v618, 1.0
        %vm747 = vcmp.lt.f32.partialorder %v619, 1.0
        %vm748 = vcmp.lt.f32.partialorder %v620, 1.0
        %vm749 = vcmp.lt.f32.partialorder %v621, 1.0
        %vm750 = vcmp.lt.f32.partialorder %v622, 1.0
        %vm751 = vcmp.lt.f32.partialorder %v623, 1.0
        %vm752 = vcmp.lt.f32.partialorder %v624, 1.0
        %vm753 = vcmp.lt.f32.partialorder %v625, 1.0
        %vm754 = vcmp.lt.f32.partialorder %v626, 1.0
        %vm755 = vcmp.lt.f32.partialorder %v627, 1.0
        %vm756 = vcmp.lt.f32.partialorder %v628, 1.0
        %vm757 = vcmp.lt.f32.partialorder %v629, 1.0
        %vm758 = vcmp.lt.f32.partialorder %v630, 1.0
        %vm759 = vcmp.lt.f32.partialorder %v631, 1.0
        %vm760 = vcmp.lt.f32.partialorder %v632, 1.0
        %vm761 = vcmp.lt.f32.partialorder %v633, 1.0
        %vm762 = vcmp.lt.f32.partialorder %v634, 1.0
        %vm763 = vcmp.lt.f32.partialorder %v635, 1.0
        %vm764 = vcmp.lt.f32.partialorder %v636, 1.0
        %vm765 = vcmp.lt.f32.partialorder %v637, 1.0
        %vm766 = vcmp.lt.f32.partialorder %v638, 1.0
        %vm767 = vcmp.lt.f32.partialorder %v639, 1.0
        %vm768 = vcmp.lt.f32.partialorder %v640, 1.0
        %vm769 = vcmp.lt.f32.partialorder %v641, 1.0
        %vm770 = vcmp.lt.f32.partialorder %v642, 1.0
        %vm771 = vcmp.lt.f32.partialorder %v643, 1.0
        %vm772 = vcmp.lt.f32.partialorder %v644, 1.0
        %vm773 = vcmp.lt.f32.partialorder %v645, 1.0
        %vm774 = vcmp.lt.f32.partialorder %v646, 1.0
        %vm775 = vcmp.lt.f32.partialorder %v647, 1.0
        %vm776 = vcmp.lt.f32.partialorder %v648, 1.0
        %vm777 = vcmp.lt.f32.partialorder %v649, 1.0
        %vm778 = vcmp.lt.f32.partialorder %v650, 1.0
        %vm779 = vcmp.lt.f32.partialorder %v651, 1.0
        %vm780 = vcmp.lt.f32.partialorder %v652, 1.0
        %vm781 = vcmp.lt.f32.partialorder %v653, 1.0
        %vm782 = vcmp.lt.f32.partialorder %v654, 1.0
        %vm783 = vcmp.lt.f32.partialorder %v655, 1.0
        %vm784 = vcmp.lt.f32.partialorder %v656, 1.0
        %vm785 = vcmp.lt.f32.partialorder %v657, 1.0
        %vm786 = vcmp.lt.f32.partialorder %v658, 1.0
        %vm787 = vcmp.lt.f32.partialorder %v659, 1.0
        %vm788 = vcmp.lt.f32.partialorder %v660, 1.0
        %vm789 = vcmp.lt.f32.partialorder %v661, 1.0
        %vm790 = vcmp.lt.f32.partialorder %v662, 1.0
        %vm791 = vcmp.lt.f32.partialorder %v663, 1.0
        %vm792 = vcmp.lt.f32.partialorder %v664, 1.0
        %vm793 = vcmp.lt.f32.partialorder %v665, 1.0
        %vm794 = vcmp.lt.f32.partialorder %v666, 1.0
        %vm795 = vcmp.lt.f32.partialorder %v667, 1.0
        %vm796 = vcmp.lt.f32.partialorder %v668, 1.0
        %vm797 = vcmp.lt.f32.partialorder %v669, 1.0
        %vm798 = vcmp.lt.f32.partialorder %v670, 1.0
        %vm799 = vcmp.lt.f32.partialorder %v671, 1.0
        %vm800 = vcmp.lt.f32.partialorder %v672, 1.0
        %vm801 = vcmp.lt.f32.partialorder %v673, 1.0
        %vm802 = vcmp.lt.f32.partialorder %v674, 1.0
        %vm803 = vcmp.lt.f32.partialorder %v675, 1.0
        %vm804 = vcmp.lt.f32.partialorder %v676, 1.0
        %vm805 = vcmp.lt.f32.partialorder %v677, 1.0
        %vm806 = vcmp.lt.f32.partialorder %v678, 1.0
        %vm807 = vcmp.lt.f32.partialorder %v679, 1.0
        %vm808 = vcmp.lt.f32.partialorder %v680, 1.0
        %vm809 = vcmp.lt.f32.partialorder %v681, 1.0
        %vm810 = vcmp.lt.f32.partialorder %v682, 1.0
        %vm811 = vcmp.lt.f32.partialorder %v683, 1.0
        %vm812 = vcmp.lt.f32.partialorder %v684, 1.0
        %vm813 = vcmp.lt.f32.partialorder %v685, 1.0
        %vm814 = vcmp.lt.f32.partialorder %v686, 1.0
        %vm815 = vcmp.lt.f32.partialorder %v687, 1.0
        %vm816 = vcmp.lt.f32.partialorder %v688, 1.0
        %vm817 = vcmp.lt.f32.partialorder %v689, 1.0
        %vm818 = vcmp.lt.f32.partialorder %v690, 1.0
        %vm819 = vcmp.lt.f32.partialorder %v691, 1.0
        %vm820 = vcmp.lt.f32.partialorder %v692, 1.0
        %vm821 = vcmp.lt.f32.partialorder %v693, 1.0
        %vm822 = vcmp.lt.f32.partialorder %v694, 1.0
        %vm823 = vcmp.lt.f32.partialorder %v695, 1.0
        %vm824 = vcmp.lt.f32.partialorder %v696, 1.0
        %vm825 = vcmp.lt.f32.partialorder %v697, 1.0
        %vm826 = vcmp.lt.f32.partialorder %v698, 1.0
        %vm827 = vcmp.lt.f32.partialorder %v699, 1.0
        %vm828 = vcmp.lt.f32.partialorder %v700, 1.0
        %vm829 = vcmp.lt.f32.partialorder %v701, 1.0
        %vm830 = vcmp.lt.f32.partialorder %v702, 1.0
        %vm831 = vcmp.lt.f32.partialorder %v703, 1.0
        %vm832 = vcmp.lt.f32.partialorder %v704, 1.0
        %vm833 = vcmp.lt.f32.partialorder %v705, 1.0
        %vm834 = vcmp.lt.f32.partialorder %v706, 1.0
        %vm835 = vcmp.lt.f32.partialorder %v707, 1.0
        %vm836 = vcmp.lt.f32.partialorder %v708, 1.0
        %vm837 = vcmp.lt.f32.partialorder %v709, 1.0
        %vm838 = vcmp.lt.f32.partialorder %v710, 1.0
        %vm839 = vcmp.lt.f32.partialorder %v711, 1.0
        %vm840 = vcmp.lt.f32.partialorder %v712, 1.0
        %vm841 = vcmp.lt.f32.partialorder %v713, 1.0
        %vm842 = vcmp.lt.f32.partialorder %v714, 1.0
        %v843 = vmul.f32 %v587, 0.5
        %v844 = vmul.f32 %v588, 0.5
        %v845 = vmul.f32 %v589, 0.5
        %v846 = vmul.f32 %v590, 0.5
        %v847 = vmul.f32 %v591, 0.5
        %v848 = vmul.f32 %v592, 0.5
        %v849 = vmul.f32 %v593, 0.5
        %v850 = vmul.f32 %v594, 0.5
        %v851 = vmul.f32 %v595, 0.5
        %v852 = vmul.f32 %v596, 0.5
        %v853 = vmul.f32 %v597, 0.5
        %v854 = vmul.f32 %v598, 0.5
        %v855 = vmul.f32 %v599, 0.5
        %v856 = vmul.f32 %v600, 0.5
        %v857 = vmul.f32 %v601, 0.5
        %v858 = vmul.f32 %v602, 0.5
        %v859 = vmul.f32 %v603, 0.5
        %v860 = vmul.f32 %v604, 0.5
        %v861 = vmul.f32 %v605, 0.5
        %v862 = vmul.f32 %v606, 0.5
        %v863 = vmul.f32 %v607, 0.5
        %v864 = vmul.f32 %v608, 0.5
        %v865 = vmul.f32 %v609, 0.5
        %v866 = vmul.f32 %v610, 0.5
        %v867 = vmul.f32 %v611, 0.5
        %v868 = vmul.f32 %v612, 0.5
        %v869 = vmul.f32 %v613, 0.5
        %v870 = vmul.f32 %v614, 0.5
        %v871 = vmul.f32 %v615, 0.5
        %v872 = vmul.f32 %v616, 0.5
        %v873 = vmul.f32 %v617, 0.5
        %v874 = vmul.f32 %v618, 0.5
        %v875 = vmul.f32 %v619, 0.5
        %v876 = vmul.f32 %v620, 0.5
        %v877 = vmul.f32 %v621, 0.5
        %v878 = vmul.f32 %v622, 0.5
        %v879 = vmul.f32 %v623, 0.5
        %v880 = vmul.f32 %v624, 0.5
        %v881 = vmul.f32 %v625, 0.5
        %v882 = vmul.f32 %v626, 0.5
        %v883 = vmul.f32 %v627, 0.5
        %v884 = vmul.f32 %v628, 0.5
        %v885 = vmul.f32 %v629, 0.5
        %v886 = vmul.f32 %v630, 0.5
        %v887 = vmul.f32 %v631, 0.5
        %v888 = vmul.f32 %v632, 0.5
        %v889 = vmul.f32 %v633, 0.5
        %v890 = vmul.f32 %v634, 0.5
        %v891 = vmul.f32 %v635, 0.5
        %v892 = vmul.f32 %v636, 0.5
        %v893 = vmul.f32 %v637, 0.5
        %v894 = vmul.f32 %v638, 0.5
        %v895 = vmul.f32 %v639, 0.5
        %v896 = vmul.f32 %v640, 0.5
        %v897 = vmul.f32 %v641, 0.5
        %v898 = vmul.f32 %v642, 0.5
        %v899 = vmul.f32 %v643, 0.5
        %v900 = vmul.f32 %v644, 0.5
        %v901 = vmul.f32 %v645, 0.5
        %v902 = vmul.f32 %v646, 0.5
        %v903 = vmul.f32 %v647, 0.5
        %v904 = vmul.f32 %v648, 0.5
        %v905 = vmul.f32 %v649, 0.5
        %v906 = vmul.f32 %v650, 0.5
        %v907 = vmul.f32 %v651, 0.5
        %v908 = vmul.f32 %v652, 0.5
        %v909 = vmul.f32 %v653, 0.5
        %v910 = vmul.f32 %v654, 0.5
        %v911 = vmul.f32 %v655, 0.5
        %v912 = vmul.f32 %v656, 0.5
        %v913 = vmul.f32 %v657, 0.5
        %v914 = vmul.f32 %v658, 0.5
        %v915 = vmul.f32 %v659, 0.5
        %v916 = vmul.f32 %v660, 0.5
        %v917 = vmul.f32 %v661, 0.5
        %v918 = vmul.f32 %v662, 0.5
        %v919 = vmul.f32 %v663, 0.5
        %v920 = vmul.f32 %v664, 0.5
        %v921 = vmul.f32 %v665, 0.5
        %v922 = vmul.f32 %v666, 0.5
        %v923 = vmul.f32 %v667, 0.5
        %v924 = vmul.f32 %v668, 0.5
        %v925 = vmul.f32 %v669, 0.5
        %v926 = vmul.f32 %v670, 0.5
        %v927 = vmul.f32 %v671, 0.5
        %v928 = vmul.f32 %v672, 0.5
        %v929 = vmul.f32 %v673, 0.5
        %v930 = vmul.f32 %v674, 0.5
        %v931 = vmul.f32 %v675, 0.5
        %v932 = vmul.f32 %v676, 0.5
        %v933 = vmul.f32 %v677, 0.5
        %v934 = vmul.f32 %v678, 0.5
        %v935 = vmul.f32 %v679, 0.5
        %v936 = vmul.f32 %v680, 0.5
        %v937 = vmul.f32 %v681, 0.5
        %v938 = vmul.f32 %v682, 0.5
        %v939 = vmul.f32 %v683, 0.5
        %v940 = vmul.f32 %v684, 0.5
        %v941 = vmul.f32 %v685, 0.5
        %v942 = vmul.f32 %v686, 0.5
        %v943 = vmul.f32 %v687, 0.5
        %v944 = vmul.f32 %v688, 0.5
        %v945 = vmul.f32 %v689, 0.5
        %v946 = vmul.f32 %v690, 0.5
        %v947 = vmul.f32 %v691, 0.5
        %v948 = vmul.f32 %v692, 0.5
        %v949 = vmul.f32 %v693, 0.5
        %v950 = vmul.f32 %v694, 0.5
        %v951 = vmul.f32 %v695, 0.5
        %v952 = vmul.f32 %v696, 0.5
        %v953 = vmul.f32 %v697, 0.5
        %v954 = vmul.f32 %v698, 0.5
        %v955 = vmul.f32 %v699, 0.5
        %v956 = vmul.f32 %v700, 0.5
        %v957 = vmul.f32 %v701, 0.5
        %v958 = vmul.f32 %v702, 0.5
        %v959 = vmul.f32 %v703, 0.5
        %v960 = vmul.f32 %v704, 0.5
        %v961 = vmul.f32 %v705, 0.5
        %v962 = vmul.f32 %v706, 0.5
        %v963 = vmul.f32 %v707, 0.5
        %v964 = vmul.f32 %v708, 0.5
        %v965 = vmul.f32 %v709, 0.5
        %v966 = vmul.f32 %v710, 0.5
        %v967 = vmul.f32 %v711, 0.5
        %v968 = vmul.f32 %v712, 0.5
        %v969 = vmul.f32 %v713, 0.5
        %v970 = vmul.f32 %v714, 0.5
        %v971 = vmul.f32 %v843, %v587
        %v972 = vmul.f32 %v844, %v588
        %v973 = vmul.f32 %v845, %v589
        %v974 = vmul.f32 %v846, %v590
        %v975 = vmul.f32 %v847, %v591
        %v976 = vmul.f32 %v848, %v592
        %v977 = vmul.f32 %v849, %v593
        %v978 = vmul.f32 %v850, %v594
        %v979 = vmul.f32 %v851, %v595
        %v980 = vmul.f32 %v852, %v596
        %v981 = vmul.f32 %v853, %v597
        %v982 = vmul.f32 %v854, %v598
        %v983 = vmul.f32 %v855, %v599
        %v984 = vmul.f32 %v856, %v600
        %v985 = vmul.f32 %v857, %v601
        %v986 = vmul.f32 %v858, %v602
        %v987 = vmul.f32 %v859, %v603
        %v988 = vmul.f32 %v860, %v604
        %v989 = vmul.f32 %v861, %v605
        %v990 = vmul.f32 %v862, %v606
        %v991 = vmul.f32 %v863, %v607
        %v992 = vmul.f32 %v864, %v608
        %v993 = vmul.f32 %v865, %v609
        %v994 = vmul.f32 %v866, %v610
        %v995 = vmul.f32 %v867, %v611
        %v996 = vmul.f32 %v868, %v612
        %v997 = vmul.f32 %v869, %v613
        %v998 = vmul.f32 %v870, %v614
        %v999 = vmul.f32 %v871, %v615
        %v1000 = vmul.f32 %v872, %v616
        %v1001 = vmul.f32 %v873, %v617
        %v1002 = vmul.f32 %v874, %v618
        %v1003 = vmul.f32 %v875, %v619
        %v1004 = vmul.f32 %v876, %v620
        %v1005 = vmul.f32 %v877, %v621
        %v1006 = vmul.f32 %v878, %v622
        %v1007 = vmul.f32 %v879, %v623
        %v1008 = vmul.f32 %v880, %v624
        %v1009 = vmul.f32 %v881, %v625
        %v1010 = vmul.f32 %v882, %v626
        %v1011 = vmul.f32 %v883, %v627
        %v1012 = vmul.f32 %v884, %v628
        %v1013 = vmul.f32 %v885, %v629
        %v1014 = vmul.f32 %v886, %v630
        %v1015 = vmul.f32 %v887, %v631
        %v1016 = vmul.f32 %v888, %v632
        %v1017 = vmul.f32 %v889, %v633
        %v1018 = vmul.f32 %v890, %v634
        %v1019 = vmul.f32 %v891, %v635
        %v1020 = vmul.f32 %v892, %v636
        %v1021 = vmul.f32 %v893, %v637
        %v1022 = vmul.f32 %v894, %v638
        %v1023 = vmul.f32 %v895, %v639
        %v1024 = vmul.f32 %v896, %v640
        %v1025 = vmul.f32 %v897, %v641
        %v1026 = vmul.f32 %v898, %v642
        %v1027 = vmul.f32 %v899, %v643
        %v1028 = vmul.f32 %v900, %v644
        %v1029 = vmul.f32 %v901, %v645
        %v1030 = vmul.f32 %v902, %v646
        %v1031 = vmul.f32 %v903, %v647
        %v1032 = vmul.f32 %v904, %v648
        %v1033 = vmul.f32 %v905, %v649
        %v1034 = vmul.f32 %v906, %v650
        %v1035 = vmul.f32 %v907, %v651
        %v1036 = vmul.f32 %v908, %v652
        %v1037 = vmul.f32 %v909, %v653
        %v1038 = vmul.f32 %v910, %v654
        %v1039 = vmul.f32 %v911, %v655
        %v1040 = vmul.f32 %v912, %v656
        %v1041 = vmul.f32 %v913, %v657
        %v1042 = vmul.f32 %v914, %v658
        %v1043 = vmul.f32 %v915, %v659
        %v1044 = vmul.f32 %v916, %v660
        %v1045 = vmul.f32 %v917, %v661
        %v1046 = vmul.f32 %v918, %v662
        %v1047 = vmul.f32 %v919, %v663
        %v1048 = vmul.f32 %v920, %v664
        %v1049 = vmul.f32 %v921, %v665
        %v1050 = vmul.f32 %v922, %v666
        %v1051 = vmul.f32 %v923, %v667
        %v1052 = vmul.f32 %v924, %v668
        %v1053 = vmul.f32 %v925, %v669
        %v1054 = vmul.f32 %v926, %v670
        %v1055 = vmul.f32 %v927, %v671
        %v1056 = vmul.f32 %v928, %v672
        %v1057 = vmul.f32 %v929, %v673
        %v1058 = vmul.f32 %v930, %v674
        %v1059 = vmul.f32 %v931, %v675
        %v1060 = vmul.f32 %v932, %v676
        %v1061 = vmul.f32 %v933, %v677
        %v1062 = vmul.f32 %v934, %v678
        %v1063 = vmul.f32 %v935, %v679
        %v1064 = vmul.f32 %v936, %v680
        %v1065 = vmul.f32 %v937, %v681
        %v1066 = vmul.f32 %v938, %v682
        %v1067 = vmul.f32 %v939, %v683
        %v1068 = vmul.f32 %v940, %v684
        %v1069 = vmul.f32 %v941, %v685
        %v1070 = vmul.f32 %v942, %v686
        %v1071 = vmul.f32 %v943, %v687
        %v1072 = vmul.f32 %v944, %v688
        %v1073 = vmul.f32 %v945, %v689
        %v1074 = vmul.f32 %v946, %v690
        %v1075 = vmul.f32 %v947, %v691
        %v1076 = vmul.f32 %v948, %v692
        %v1077 = vmul.f32 %v949, %v693
        %v1078 = vmul.f32 %v950, %v694
        %v1079 = vmul.f32 %v951, %v695
        %v1080 = vmul.f32 %v952, %v696
        %v1081 = vmul.f32 %v953, %v697
        %v1082 = vmul.f32 %v954, %v698
        %v1083 = vmul.f32 %v955, %v699
        %v1084 = vmul.f32 %v956, %v700
        %v1085 = vmul.f32 %v957, %v701
        %v1086 = vmul.f32 %v958, %v702
        %v1087 = vmul.f32 %v959, %v703
        %v1088 = vmul.f32 %v960, %v704
        %v1089 = vmul.f32 %v961, %v705
        %v1090 = vmul.f32 %v962, %v706
        %v1091 = vmul.f32 %v963, %v707
        %v1092 = vmul.f32 %v964, %v708
        %v1093 = vmul.f32 %v965, %v709
        %v1094 = vmul.f32 %v966, %v710
        %v1095 = vmul.f32 %v967, %v711
        %v1096 = vmul.f32 %v968, %v712
        %v1097 = vmul.f32 %v969, %v713
        %v1098 = vmul.f32 %v970, %v714
        %v1099 = vsub.f32 %v587, 0.5
        %v1100 = vsub.f32 %v588, 0.5
        %v1101 = vsub.f32 %v589, 0.5
        %v1102 = vsub.f32 %v590, 0.5
        %v1103 = vsub.f32 %v591, 0.5
        %v1104 = vsub.f32 %v592, 0.5
        %v1105 = vsub.f32 %v593, 0.5
        %v1106 = vsub.f32 %v594, 0.5
        %v1107 = vsub.f32 %v595, 0.5
        %v1108 = vsub.f32 %v596, 0.5
        %v1109 = vsub.f32 %v597, 0.5
        %v1110 = vsub.f32 %v598, 0.5
        %v1111 = vsub.f32 %v599, 0.5
        %v1112 = vsub.f32 %v600, 0.5
        %v1113 = vsub.f32 %v601, 0.5
        %v1114 = vsub.f32 %v602, 0.5
        %v1115 = vsub.f32 %v603, 0.5
        %v1116 = vsub.f32 %v604, 0.5
        %v1117 = vsub.f32 %v605, 0.5
        %v1118 = vsub.f32 %v606, 0.5
        %v1119 = vsub.f32 %v607, 0.5
        %v1120 = vsub.f32 %v608, 0.5
        %v1121 = vsub.f32 %v609, 0.5
        %v1122 = vsub.f32 %v610, 0.5
        %v1123 = vsub.f32 %v611, 0.5
        %v1124 = vsub.f32 %v612, 0.5
        %v1125 = vsub.f32 %v613, 0.5
        %v1126 = vsub.f32 %v614, 0.5
        %v1127 = vsub.f32 %v615, 0.5
        %v1128 = vsub.f32 %v616, 0.5
        %v1129 = vsub.f32 %v617, 0.5
        %v1130 = vsub.f32 %v618, 0.5
        %v1131 = vsub.f32 %v619, 0.5
        %v1132 = vsub.f32 %v620, 0.5
        %v1133 = vsub.f32 %v621, 0.5
        %v1134 = vsub.f32 %v622, 0.5
        %v1135 = vsub.f32 %v623, 0.5
        %v1136 = vsub.f32 %v624, 0.5
        %v1137 = vsub.f32 %v625, 0.5
        %v1138 = vsub.f32 %v626, 0.5
        %v1139 = vsub.f32 %v627, 0.5
        %v1140 = vsub.f32 %v628, 0.5
        %v1141 = vsub.f32 %v629, 0.5
        %v1142 = vsub.f32 %v630, 0.5
        %v1143 = vsub.f32 %v631, 0.5
        %v1144 = vsub.f32 %v632, 0.5
        %v1145 = vsub.f32 %v633, 0.5
        %v1146 = vsub.f32 %v634, 0.5
        %v1147 = vsub.f32 %v635, 0.5
        %v1148 = vsub.f32 %v636, 0.5
        %v1149 = vsub.f32 %v637, 0.5
        %v1150 = vsub.f32 %v638, 0.5
        %v1151 = vsub.f32 %v639, 0.5
        %v1152 = vsub.f32 %v640, 0.5
        %v1153 = vsub.f32 %v641, 0.5
        %v1154 = vsub.f32 %v642, 0.5
        %v1155 = vsub.f32 %v643, 0.5
        %v1156 = vsub.f32 %v644, 0.5
        %v1157 = vsub.f32 %v645, 0.5
        %v1158 = vsub.f32 %v646, 0.5
        %v1159 = vsub.f32 %v647, 0.5
        %v1160 = vsub.f32 %v648, 0.5
        %v1161 = vsub.f32 %v649, 0.5
        %v1162 = vsub.f32 %v650, 0.5
        %v1163 = vsub.f32 %v651, 0.5
        %v1164 = vsub.f32 %v652, 0.5
        %v1165 = vsub.f32 %v653, 0.5
        %v1166 = vsub.f32 %v654, 0.5
        %v1167 = vsub.f32 %v655, 0.5
        %v1168 = vsub.f32 %v656, 0.5
        %v1169 = vsub.f32 %v657, 0.5
        %v1170 = vsub.f32 %v658, 0.5
        %v1171 = vsub.f32 %v659, 0.5
        %v1172 = vsub.f32 %v660, 0.5
        %v1173 = vsub.f32 %v661, 0.5
        %v1174 = vsub.f32 %v662, 0.5
        %v1175 = vsub.f32 %v663, 0.5
        %v1176 = vsub.f32 %v664, 0.5
        %v1177 = vsub.f32 %v665, 0.5
        %v1178 = vsub.f32 %v666, 0.5
        %v1179 = vsub.f32 %v667, 0.5
        %v1180 = vsub.f32 %v668, 0.5
        %v1181 = vsub.f32 %v669, 0.5
        %v1182 = vsub.f32 %v670, 0.5
        %v1183 = vsub.f32 %v671, 0.5
        %v1184 = vsub.f32 %v672, 0.5
        %v1185 = vsub.f32 %v673, 0.5
        %v1186 = vsub.f32 %v674, 0.5
        %v1187 = vsub.f32 %v675, 0.5
        %v1188 = vsub.f32 %v676, 0.5
        %v1189 = vsub.f32 %v677, 0.5
        %v1190 = vsub.f32 %v678, 0.5
        %v1191 = vsub.f32 %v679, 0.5
        %v1192 = vsub.f32 %v680, 0.5
        %v1193 = vsub.f32 %v681, 0.5
        %v1194 = vsub.f32 %v682, 0.5
        %v1195 = vsub.f32 %v683, 0.5
        %v1196 = vsub.f32 %v684, 0.5
        %v1197 = vsub.f32 %v685, 0.5
        %v1198 = vsub.f32 %v686, 0.5
        %v1199 = vsub.f32 %v687, 0.5
        %v1200 = vsub.f32 %v688, 0.5
        %v1201 = vsub.f32 %v689, 0.5
        %v1202 = vsub.f32 %v690, 0.5
        %v1203 = vsub.f32 %v691, 0.5
        %v1204 = vsub.f32 %v692, 0.5
        %v1205 = vsub.f32 %v693, 0.5
        %v1206 = vsub.f32 %v694, 0.5
        %v1207 = vsub.f32 %v695, 0.5
        %v1208 = vsub.f32 %v696, 0.5
        %v1209 = vsub.f32 %v697, 0.5
        %v1210 = vsub.f32 %v698, 0.5
        %v1211 = vsub.f32 %v699, 0.5
        %v1212 = vsub.f32 %v700, 0.5
        %v1213 = vsub.f32 %v701, 0.5
        %v1214 = vsub.f32 %v702, 0.5
        %v1215 = vsub.f32 %v703, 0.5
        %v1216 = vsub.f32 %v704, 0.5
        %v1217 = vsub.f32 %v705, 0.5
        %v1218 = vsub.f32 %v706, 0.5
        %v1219 = vsub.f32 %v707, 0.5
        %v1220 = vsub.f32 %v708, 0.5
        %v1221 = vsub.f32 %v709, 0.5
        %v1222 = vsub.f32 %v710, 0.5
        %v1223 = vsub.f32 %v711, 0.5
        %v1224 = vsub.f32 %v712, 0.5
        %v1225 = vsub.f32 %v713, 0.5
        %v1226 = vsub.f32 %v714, 0.5
        %v1227 = vsel %vm715, %v971, %v1099
        %v1228 = vsel %vm716, %v972, %v1100
        %v1229 = vsel %vm717, %v973, %v1101
        %v1230 = vsel %vm718, %v974, %v1102
        %v1231 = vsel %vm719, %v975, %v1103
        %v1232 = vsel %vm720, %v976, %v1104
        %v1233 = vsel %vm721, %v977, %v1105
        %v1234 = vsel %vm722, %v978, %v1106
        %v1235 = vsel %vm723, %v979, %v1107
        %v1236 = vsel %vm724, %v980, %v1108
        %v1237 = vsel %vm725, %v981, %v1109
        %v1238 = vsel %vm726, %v982, %v1110
        %v1239 = vsel %vm727, %v983, %v1111
        %v1240 = vsel %vm728, %v984, %v1112
        %v1241 = vsel %vm729, %v985, %v1113
        %v1242 = vsel %vm730, %v986, %v1114
        %v1243 = vsel %vm731, %v987, %v1115
        %v1244 = vsel %vm732, %v988, %v1116
        %v1245 = vsel %vm733, %v989, %v1117
        %v1246 = vsel %vm734, %v990, %v1118
        %v1247 = vsel %vm735, %v991, %v1119
        %v1248 = vsel %vm736, %v992, %v1120
        %v1249 = vsel %vm737, %v993, %v1121
        %v1250 = vsel %vm738, %v994, %v1122
        %v1251 = vsel %vm739, %v995, %v1123
        %v1252 = vsel %vm740, %v996, %v1124
        %v1253 = vsel %vm741, %v997, %v1125
        %v1254 = vsel %vm742, %v998, %v1126
        %v1255 = vsel %vm743, %v999, %v1127
        %v1256 = vsel %vm744, %v1000, %v1128
        %v1257 = vsel %vm745, %v1001, %v1129
        %v1258 = vsel %vm746, %v1002, %v1130
        %v1259 = vsel %vm747, %v1003, %v1131
        %v1260 = vsel %vm748, %v1004, %v1132
        %v1261 = vsel %vm749, %v1005, %v1133
        %v1262 = vsel %vm750, %v1006, %v1134
        %v1263 = vsel %vm751, %v1007, %v1135
        %v1264 = vsel %vm752, %v1008, %v1136
        %v1265 = vsel %vm753, %v1009, %v1137
        %v1266 = vsel %vm754, %v1010, %v1138
        %v1267 = vsel %vm755, %v1011, %v1139
        %v1268 = vsel %vm756, %v1012, %v1140
        %v1269 = vsel %vm757, %v1013, %v1141
        %v1270 = vsel %vm758, %v1014, %v1142
        %v1271 = vsel %vm759, %v1015, %v1143
        %v1272 = vsel %vm760, %v1016, %v1144
        %v1273 = vsel %vm761, %v1017, %v1145
        %v1274 = vsel %vm762, %v1018, %v1146
        %v1275 = vsel %vm763, %v1019, %v1147
        %v1276 = vsel %vm764, %v1020, %v1148
        %v1277 = vsel %vm765, %v1021, %v1149
        %v1278 = vsel %vm766, %v1022, %v1150
        %v1279 = vsel %vm767, %v1023, %v1151
        %v1280 = vsel %vm768, %v1024, %v1152
        %v1281 = vsel %vm769, %v1025, %v1153
        %v1282 = vsel %vm770, %v1026, %v1154
        %v1283 = vsel %vm771, %v1027, %v1155
        %v1284 = vsel %vm772, %v1028, %v1156
        %v1285 = vsel %vm773, %v1029, %v1157
        %v1286 = vsel %vm774, %v1030, %v1158
        %v1287 = vsel %vm775, %v1031, %v1159
        %v1288 = vsel %vm776, %v1032, %v1160
        %v1289 = vsel %vm777, %v1033, %v1161
        %v1290 = vsel %vm778, %v1034, %v1162
        %v1291 = vsel %vm779, %v1035, %v1163
        %v1292 = vsel %vm780, %v1036, %v1164
        %v1293 = vsel %vm781, %v1037, %v1165
        %v1294 = vsel %vm782, %v1038, %v1166
        %v1295 = vsel %vm783, %v1039, %v1167
        %v1296 = vsel %vm784, %v1040, %v1168
        %v1297 = vsel %vm785, %v1041, %v1169
        %v1298 = vsel %vm786, %v1042, %v1170
        %v1299 = vsel %vm787, %v1043, %v1171
        %v1300 = vsel %vm788, %v1044, %v1172
        %v1301 = vsel %vm789, %v1045, %v1173
        %v1302 = vsel %vm790, %v1046, %v1174
        %v1303 = vsel %vm791, %v1047, %v1175
        %v1304 = vsel %vm792, %v1048, %v1176
        %v1305 = vsel %vm793, %v1049, %v1177
        %v1306 = vsel %vm794, %v1050, %v1178
        %v1307 = vsel %vm795, %v1051, %v1179
        %v1308 = vsel %vm796, %v1052, %v1180
        %v1309 = vsel %vm797, %v1053, %v1181
        %v1310 = vsel %vm798, %v1054, %v1182
        %v1311 = vsel %vm799, %v1055, %v1183
        %v1312 = vsel %vm800, %v1056, %v1184
        %v1313 = vsel %vm801, %v1057, %v1185
        %v1314 = vsel %vm802, %v1058, %v1186
        %v1315 = vsel %vm803, %v1059, %v1187
        %v1316 = vsel %vm804, %v1060, %v1188
        %v1317 = vsel %vm805, %v1061, %v1189
        %v1318 = vsel %vm806, %v1062, %v1190
        %v1319 = vsel %vm807, %v1063, %v1191
        %v1320 = vsel %vm808, %v1064, %v1192
        %v1321 = vsel %vm809, %v1065, %v1193
        %v1322 = vsel %vm810, %v1066, %v1194
        %v1323 = vsel %vm811, %v1067, %v1195
        %v1324 = vsel %vm812, %v1068, %v1196
        %v1325 = vsel %vm813, %v1069, %v1197
        %v1326 = vsel %vm814, %v1070, %v1198
        %v1327 = vsel %vm815, %v1071, %v1199
        %v1328 = vsel %vm816, %v1072, %v1200
        %v1329 = vsel %vm817, %v1073, %v1201
        %v1330 = vsel %vm818, %v1074, %v1202
        %v1331 = vsel %vm819, %v1075, %v1203
        %v1332 = vsel %vm820, %v1076, %v1204
        %v1333 = vsel %vm821, %v1077, %v1205
        %v1334 = vsel %vm822, %v1078, %v1206
        %v1335 = vsel %vm823, %v1079, %v1207
        %v1336 = vsel %vm824, %v1080, %v1208
        %v1337 = vsel %vm825, %v1081, %v1209
        %v1338 = vsel %vm826, %v1082, %v1210
        %v1339 = vsel %vm827, %v1083, %v1211
        %v1340 = vsel %vm828, %v1084, %v1212
        %v1341 = vsel %vm829, %v1085, %v1213
        %v1342 = vsel %vm830, %v1086, %v1214
        %v1343 = vsel %vm831, %v1087, %v1215
        %v1344 = vsel %vm832, %v1088, %v1216
        %v1345 = vsel %vm833, %v1089, %v1217
        %v1346 = vsel %vm834, %v1090, %v1218
        %v1347 = vsel %vm835, %v1091, %v1219
        %v1348 = vsel %vm836, %v1092, %v1220
        %v1349 = vsel %vm837, %v1093, %v1221
        %v1350 = vsel %vm838, %v1094, %v1222
        %v1351 = vsel %vm839, %v1095, %v1223
        %v1352 = vsel %vm840, %v1096, %v1224
        %v1353 = vsel %vm841, %v1097, %v1225
        %v1354 = vsel %vm842, %v1098, %v1226
        %v1355 = vadd.f32 %v1227, %v1228
        %v1356 = vadd.f32 %v1355, %v1229
        %v1357 = vadd.f32 %v1356, %v1230
        %v1358 = vadd.f32 %v1357, %v1231
        %v1359 = vadd.f32 %v1358, %v1232
        %v1360 = vadd.f32 %v1359, %v1233
        %v1361 = vadd.f32 %v1360, %v1234
        %v1362 = vadd.f32 %v1361, %v1235
        %v1363 = vadd.f32 %v1362, %v1236
        %v1364 = vadd.f32 %v1363, %v1237
        %v1365 = vadd.f32 %v1364, %v1238
        %v1366 = vadd.f32 %v1365, %v1239
        %v1367 = vadd.f32 %v1366, %v1240
        %v1368 = vadd.f32 %v1367, %v1241
        %v1369 = vadd.f32 %v1368, %v1242
        %v1370 = vadd.f32 %v1369, %v1243
        %v1371 = vadd.f32 %v1370, %v1244
        %v1372 = vadd.f32 %v1371, %v1245
        %v1373 = vadd.f32 %v1372, %v1246
        %v1374 = vadd.f32 %v1373, %v1247
        %v1375 = vadd.f32 %v1374, %v1248
        %v1376 = vadd.f32 %v1375, %v1249
        %v1377 = vadd.f32 %v1376, %v1250
        %v1378 = vadd.f32 %v1377, %v1251
        %v1379 = vadd.f32 %v1378, %v1252
        %v1380 = vadd.f32 %v1379, %v1253
        %v1381 = vadd.f32 %v1380, %v1254
        %v1382 = vadd.f32 %v1381, %v1255
        %v1383 = vadd.f32 %v1382, %v1256
        %v1384 = vadd.f32 %v1383, %v1257
        %v1385 = vadd.f32 %v1384, %v1258
        %v1386 = vadd.f32 %v1385, %v1259
        %v1387 = vadd.f32 %v1386, %v1260
        %v1388 = vadd.f32 %v1387, %v1261
        %v1389 = vadd.f32 %v1388, %v1262
        %v1390 = vadd.f32 %v1389, %v1263
        %v1391 = vadd.f32 %v1390, %v1264
        %v1392 = vadd.f32 %v1391, %v1265
        %v1393 = vadd.f32 %v1392, %v1266
        %v1394 = vadd.f32 %v1393, %v1267
        %v1395 = vadd.f32 %v1394, %v1268
        %v1396 = vadd.f32 %v1395, %v1269
        %v1397 = vadd.f32 %v1396, %v1270
        %v1398 = vadd.f32 %v1397, %v1271
        %v1399 = vadd.f32 %v1398, %v1272
        %v1400 = vadd.f32 %v1399, %v1273
        %v1401 = vadd.f32 %v1400, %v1274
        %v1402 = vadd.f32 %v1401, %v1275
        %v1403 = vadd.f32 %v1402, %v1276
        %v1404 = vadd.f32 %v1403, %v1277
        %v1405 = vadd.f32 %v1404, %v1278
        %v1406 = vadd.f32 %v1405, %v1279
        %v1407 = vadd.f32 %v1406, %v1280
        %v1408 = vadd.f32 %v1407, %v1281
        %v1409 = vadd.f32 %v1408, %v1282
        %v1410 = vadd.f32 %v1409, %v1283
        %v1411 = vadd.f32 %v1410, %v1284
        %v1412 = vadd.f32 %v1411, %v1285
        %v1413 = vadd.f32 %v1412, %v1286
        %v1414 = vadd.f32 %v1413, %v1287
        %v1415 = vadd.f32 %v1414, %v1288
        %v1416 = vadd.f32 %v1415, %v1289
        %v1417 = vadd.f32 %v1416, %v1290
        %v1418 = vadd.f32 %v1417, %v1291
        %v1419 = vadd.f32 %v1418, %v1292
        %v1420 = vadd.f32 %v1419, %v1293
        %v1421 = vadd.f32 %v1420, %v1294
        %v1422 = vadd.f32 %v1421, %v1295
        %v1423 = vadd.f32 %v1422, %v1296
        %v1424 = vadd.f32 %v1423, %v1297
        %v1425 = vadd.f32 %v1424, %v1298
        %v1426 = vadd.f32 %v1425, %v1299
        %v1427 = vadd.f32 %v1426, %v1300
        %v1428 = vadd.f32 %v1427, %v1301
        %v1429 = vadd.f32 %v1428, %v1302
        %v1430 = vadd.f32 %v1429, %v1303
        %v1431 = vadd.f32 %v1430, %v1304
        %v1432 = vadd.f32 %v1431, %v1305
        %v1433 = vadd.f32 %v1432, %v1306
        %v1434 = vadd.f32 %v1433, %v1307
        %v1435 = vadd.f32 %v1434, %v1308
        %v1436 = vadd.f32 %v1435, %v1309
        %v1437 = vadd.f32 %v1436, %v1310
        %v1438 = vadd.f32 %v1437, %v1311
        %v1439 = vadd.f32 %v1438, %v1312
        %v1440 = vadd.f32 %v1439, %v1313
        %v1441 = vadd.f32 %v1440, %v1314
        %v1442 = vadd.f32 %v1441, %v1315
        %v1443 = vadd.f32 %v1442, %v1316
        %v1444 = vadd.f32 %v1443, %v1317
        %v1445 = vadd.f32 %v1444, %v1318
        %v1446 = vadd.f32 %v1445, %v1319
        %v1447 = vadd.f32 %v1446, %v1320
        %v1448 = vadd.f32 %v1447, %v1321
        %v1449 = vadd.f32 %v1448, %v1322
        %v1450 = vadd.f32 %v1449, %v1323
        %v1451 = vadd.f32 %v1450, %v1324
        %v1452 = vadd.f32 %v1451, %v1325
        %v1453 = vadd.f32 %v1452, %v1326
        %v1454 = vadd.f32 %v1453, %v1327
        %v1455 = vadd.f32 %v1454, %v1328
        %v1456 = vadd.f32 %v1455, %v1329
        %v1457 = vadd.f32 %v1456, %v1330
        %v1458 = vadd.f32 %v1457, %v1331
        %v1459 = vadd.f32 %v1458, %v1332
        %v1460 = vadd.f32 %v1459, %v1333
        %v1461 = vadd.f32 %v1460, %v1334
        %v1462 = vadd.f32 %v1461, %v1335
        %v1463 = vadd.f32 %v1462, %v1336
        %v1464 = vadd.f32 %v1463, %v1337
        %v1465 = vadd.f32 %v1464, %v1338
        %v1466 = vadd.f32 %v1465, %v1339
        %v1467 = vadd.f32 %v1466, %v1340
        %v1468 = vadd.f32 %v1467, %v1341
        %v1469 = vadd.f32 %v1468, %v1342
        %v1470 = vadd.f32 %v1469, %v1343
        %v1471 = vadd.f32 %v1470, %v1344
        %v1472 = vadd.f32 %v1471, %v1345
        %v1473 = vadd.f32 %v1472, %v1346
        %v1474 = vadd.f32 %v1473, %v1347
        %v1475 = vadd.f32 %v1474, %v1348
        %v1476 = vadd.f32 %v1475, %v1349
        %v1477 = vadd.f32 %v1476, %v1350
        %v1478 = vadd.f32 %v1477, %v1351
        %v1479 = vadd.f32 %v1478, %v1352
        %v1480 = vadd.f32 %v1479, %v1353
        %v1481 = vadd.f32 %v1480, %v1354
        %1482 = vadd.xlane.f32.xlu0 %v1481
        %v1483 = vpop.xlane.xlu0 %1482
        %v1484 = vrot.slane %v1483, 4
        %v1485 = vadd.f32 %v1483, %v1484
        %v1486 = vrot.slane %v1485, 2
        %v1487 = vadd.f32 %v1485, %v1486
        %v1488 = vrot.slane %v1487, 1
        %v1489 = vadd.f32 %v1487, %v1488
        %s1490 = vtos %v1489
        %s1491 = sadd.f32 %s202, %s1490
        %s1492 = scalar_lea.smem [#allocation2], 0
        %1493 = sst [smem:[%s1492]] %s1491
        %p1494 = scmp.eq.s32.totalorder %s20, 1
        // Predicated region
        $region41: #{tpu_custom_call.1} parent=27 // pred_check
          %p1495 = pneg %p1494
        $region42: #{tpu_custom_call.1} parent=27 // pred_check_branch
          %1497 = sbr.rel (%p1495) target = $region44
        $region43: #{tpu_custom_call.1} parent=27 // pred_region
          %s1498 = sld [smem:[#allocation2]]
          %s1499 = scalar_lea.smem [#allocation8], 0
          %1500 = sst [smem:[%s1499]] %s1498
        $region44: #{tpu_custom_call.1} parent=27 // pred_fallthru
          _
        // Predicated region
        $region45: #{tpu_custom_call.1} parent=27 // pred_check
          %p1501 = pneg %p85
        $region46: #{tpu_custom_call.1} parent=27 // pred_check_branch
          %1503 = sbr.rel (%p1501) target = $region48
        $region47: #{tpu_custom_call.1} parent=27 // pred_region
          %1505 = vsyncadd [#allocation5], 0
          %s1507 = sshll.u32 %s2, 4
          %s1508 = int_to_ptr.hbm [resolvable:$true] %s1507
          %1510 = dma.smem_to_hbm [#allocation8], 16, %s1508, [#allocation5]
        $region48: #{tpu_custom_call.1} parent=27 // pred_fallthru
          _
        // Predicated region
        $region49: #{tpu_custom_call.1} parent=27 // pred_check
          %p1511 = pneg %p85
        $region50: #{tpu_custom_call.1} parent=27 // pred_check_branch
          %1513 = sbr.rel (%p1511) target = $region52
        $region51: #{tpu_custom_call.1} parent=27 // pred_region
          %1515 = dma.done [#allocation5], 16
        $region52: #{tpu_custom_call.1} parent=27 // pred_fallthru
          _
        %1516 = sfence
      $region28: #{tpu_custom_call.1} parent=5 // pred_fallthru
        _
      %p1517 = scmp.le.s32.totalorder 2, %s15
      // Predicated region
      $region53: #{tpu_custom_call.1} parent=5 // pred_check
        %p1518 = pneg %p1517
      $region54: #{tpu_custom_call.1} parent=5 // pred_check_branch
        %1520 = sbr.rel (%p1518) target = $region56
      $region55: #{tpu_custom_call.1} parent=5 // pred_region
        %s1521 = ssub.s32 %s15, 2
      $region56: #{tpu_custom_call.1} parent=5 // pred_fallthru
        _
    $region6: #{tpu_custom_call.1} parent=1 // loop_footer
      %s19 = sadd.s32 1, %s15
    $region7: #{tpu_custom_call.1} parent=1 // loop_footer_branch
      %14 = sbr.rel target = $region3
    $region8: #{tpu_custom_call.1} parent=1 // loop_exit
      _
    %1522 = vsyncpa [#allocation4], 1
    %s1523 = scalar_lea.sflag [#allocation4], 1
    %1524 = vsyncpa %s1523, 1
    %1525 = vsyncpa [#allocation7], 1
    %s1526 = scalar_lea.sflag [#allocation7], 1
    %1527 = vsyncpa %s1526, 1
    %1528 = vsyncpa [#allocation5], 1
    %s1529 = scalar_lea.sflag [#allocation5], 1
    %1530 = vsyncpa %s1529, 1

</llo_original>
